<compile_context>
chip_gen: v7x
topology: tpu7x:2x2x1
jax: 0.10.0
libtpu: 0.0.40
codegen_flags: <defaults>
</compile_context>

<pallas_src>
import math
import numpy as np
import jax
import jax.numpy as jnp
from jax import lax
from jax.experimental import pallas as pl
from jax.experimental.pallas import tpu as pltpu

# ----------------------------- config (small) ------------------------------
B = 2          # batch
S = 8          # sequence length
E = 32         # embed_dim
H = 4          # num_heads
D = E // H     # head_dim
LN_EPS = 1e-5


def _layer_norm(x, gamma, beta):
    # gamma/beta are (1, E); x is (R, E)
    mu = jnp.mean(x, axis=-1, keepdims=True)
    var = jnp.mean((x - mu) ** 2, axis=-1, keepdims=True)
    return (x - mu) * lax.rsqrt(var + LN_EPS) * gamma + beta


def _gelu_exact(x):
    # PyTorch nn.GELU() default = exact (erf-based) GELU
    return 0.5 * x * (1.0 + lax.erf(x * (1.0 / math.sqrt(2.0))))


def _bf16(x):
    return x.astype(jnp.bfloat16)


# ------------------------------- Pallas kernel ------------------------------
def _make_kernel(bb):
    """Build the fused block kernel handling `bb` batches per grid step."""
    R = bb * S  # rows (tokens) processed per invocation

    def kernel(
        x_ref,                      # (R, E)   f32 token rows
        wqkv_ref,                   # (E, 3E)  bf16 (in_proj^T, scale folded into Q cols)
        wo_ref,                     # (E, E)   bf16 (out_proj^T)
        ln1_g_ref, ln1_b_ref,       # (1, E)   f32
        ln2_g_ref, ln2_b_ref,       # (1, E)   f32
        w1_ref, b1_ref,             # (E, E) bf16, (1, E) f32
        w2_ref, b2_ref,
        w3_ref, b3_ref,
        o_ref,                      # (R, E)   f32
    ):
        x = x_ref[...]                                                 # (R, E) f32

        # ---- LayerNorm (attention branch), all rows/batches at once ----
        xn = _layer_norm(x, ln1_g_ref[...], ln1_b_ref[...])

        # ---- fused QKV projection (one wide bf16 cast, f32 accumulation).
        # The 1/sqrt(D) score scale is already folded into the Q columns.
        qkv = jnp.dot(_bf16(xn), wqkv_ref[...],
                      preferred_element_type=jnp.float32)              # (R, 3E) f32

        # ---- multi-head self-attention (f32 internals; no bias; dropout=id) ----
        per_batch = []
        for b in range(bb):                 # static unroll, bb <= 2
            r0 = b * S
            heads = []
            for h in range(H):              # static unroll over heads
                c = h * D
                qh = qkv[r0:r0 + S, c:c + D]                           # (S, D) f32
                kh = qkv[r0:r0 + S, E + c:E + c + D]
                vh = qkv[r0:r0 + S, 2 * E + c:2 * E + c + D]
                # q @ k^T: contract last dims directly (no explicit transpose)
                s = lax.dot_general(
                    qh, kh,
                    dimension_numbers=(((1,), (1,)), ((), ())),
                    preferred_element_type=jnp.float32)                # (S, S)
                s = s - jnp.max(s, axis=-1, keepdims=True)
                p = jnp.exp(s)
                p = p / jnp.sum(p, axis=-1, keepdims=True)             # exact divide
                heads.append(jnp.dot(p, vh,
                                     preferred_element_type=jnp.float32))  # (S, D)
            # lane-axis concat of head outputs -> one (S, E) tile
            per_batch.append(jnp.concatenate(heads, axis=-1))
        head_cat = per_batch[0] if bb == 1 else jnp.concatenate(per_batch, axis=0)

        # single out-projection dot for all rows (one wide bf16 cast)
        att = jnp.dot(_bf16(head_cat), wo_ref[...],
                      preferred_element_type=jnp.float32)              # (R, E)

        # residual 1
        x = x + att

        # ---- LayerNorm (MLP branch) ----
        xn2 = _layer_norm(x, ln2_g_ref[...], ln2_b_ref[...])

        # ---- MLP: Linear -> GELU -> Linear -> GELU -> Linear ----
        h1 = _gelu_exact(jnp.dot(_bf16(xn2), w1_ref[...],
                                 preferred_element_type=jnp.float32) + b1_ref[...])
        h2 = _gelu_exact(jnp.dot(_bf16(h1), w2_ref[...],
                                 preferred_element_type=jnp.float32) + b2_ref[...])
        h3 = jnp.dot(_bf16(h2), w3_ref[...],
                     preferred_element_type=jnp.float32) + b3_ref[...]

        # TODO(synk): dropout is identity (eval-mode semantics); training-mode RNG dropout not implemented.
        o_ref[...] = x + h3

    return kernel


# --------------------------- parameter preparation ---------------------------
def prepare_params(raw):
    """One-time prep (outside the per-call path):
      * transpose torch (out, in) weights to (in, out) so the kernel does x @ W,
      * fold the 1/sqrt(head_dim) attention scale into the Q columns of wqkv,
      * pre-cast all matmul weights to bf16 once (no per-call wrapper casts)."""
    scale = 1.0 / math.sqrt(D)
    wqkv = raw["in_proj_weight"].T                                     # (E, 3E)
    wqkv = jnp.concatenate([wqkv[:, :E] * scale, wqkv[:, E:]], axis=-1)
    return {
        "wqkv": _bf16(wqkv),
        "wo": _bf16(raw["out_proj_weight"].T),
        "ln1_g": raw["ln1_w"].reshape(1, E).astype(jnp.float32),
        "ln1_b": raw["ln1_b"].reshape(1, E).astype(jnp.float32),
        "ln2_g": raw["ln2_w"].reshape(1, E).astype(jnp.float32),
        "ln2_b": raw["ln2_b"].reshape(1, E).astype(jnp.float32),
        "w1": _bf16(raw["w1"].T), "b1": raw["b1"].reshape(1, E).astype(jnp.float32),
        "w2": _bf16(raw["w2"].T), "b2": raw["b2"].reshape(1, E).astype(jnp.float32),
        "w3": _bf16(raw["w3"].T), "b3": raw["b3"].reshape(1, E).astype(jnp.float32),
    }


# ------------------------------- wrapper ------------------------------------
def _num_grid_steps():
    """2 grid steps ('parallel' over batch) only on multi-TensorCore chips
    (v7x); single-TC v5e/v6e collapse to one step (avoids a duplicate
    ~600-cycle pipeline prologue + duplicate weight DMA at these toy shapes).
    Detection uses pltpu.get_tpu_info() when available, falling back to the
    device_kind string; everything is guarded so correctness never depends on it."""
    cores = 1
    try:
        info = pltpu.get_tpu_info()
        for attr in ("tensorcore_count", "num_tensorcores", "cores_per_chip",
                     "num_cores", "core_count"):
            v = getattr(info, attr, None)
            if isinstance(v, int) and v > 1:
                cores = v
                break
    except Exception:
        pass
    if cores <= 1:
        try:
            kind = jax.devices()[0].device_kind.lower()
            if ("v7" in kind) or ("7x" in kind):
                cores = 2
        except Exception:
            pass
    return 2 if (cores >= 2 and B % 2 == 0) else 1


def transformer_block(x, prm):
    nb = _num_grid_steps()      # grid steps
    bb = B // nb                # batches per step
    R = bb * S                  # rows per step
    kernel = _make_kernel(bb)

    x2 = x.reshape(B * S, E)    # token rows; no further reshapes inside the kernel

    def full(shape):
        return pl.BlockSpec(shape, lambda i, _n=len(shape): (0,) * _n)

    in_specs = [
        pl.BlockSpec((R, E), lambda i: (i, 0)),          # x token rows
        full((E, 3 * E)),                                # wqkv (bf16, scale folded)
        full((E, E)),                                    # wo   (bf16)
        full((1, E)), full((1, E)),                      # ln1 gamma/beta
        full((1, E)), full((1, E)),                      # ln2 gamma/beta
        full((E, E)), full((1, E)),                      # mlp w1 (bf16), b1
        full((E, E)), full((1, E)),                      # mlp w2 (bf16), b2
        full((E, E)), full((1, E)),                      # mlp w3 (bf16), b3
    ]
    out = pl.pallas_call(
        kernel,
        out_shape=jax.ShapeDtypeStruct((B * S, E), jnp.float32),
        grid=(nb,),
        in_specs=in_specs,
        out_specs=pl.BlockSpec((R, E), lambda i: (i, 0)),
        compiler_params=pltpu.CompilerParams(
            dimension_semantics=("parallel",) if nb > 1 else ("arbitrary",)),
    )(
        x2,
        prm["wqkv"], prm["wo"],
        prm["ln1_g"], prm["ln1_b"],
        prm["ln2_g"], prm["ln2_b"],
        prm["w1"], prm["b1"],
        prm["w2"], prm["b2"],
        prm["w3"], prm["b3"],
    )
    return out.reshape(B, S, E)


# --------------------------- pure-JAX reference ------------------------------
def transformer_block_ref(x, raw):
    def ln(v, g, b):
        mu = v.mean(-1, keepdims=True)
        var = ((v - mu) ** 2).mean(-1, keepdims=True)
        return (v - mu) / jnp.sqrt(var + LN_EPS) * g + b

    xn = ln(x, raw["ln1_w"], raw["ln1_b"])
    qkv = xn @ raw["in_proj_weight"].T                      # (B, S, 3E)
    q, k, v = jnp.split(qkv, 3, axis=-1)
    q = q.reshape(B, S, H, D).transpose(0, 2, 1, 3)
    k = k.reshape(B, S, H, D).transpose(0, 2, 1, 3)
    v = v.reshape(B, S, H, D).transpose(0, 2, 1, 3)
    s = jnp.einsum("bhqd,bhkd->bhqk", q, k) / math.sqrt(D)
    p = jax.nn.softmax(s, axis=-1)
    att = jnp.einsum("bhqk,bhkd->bhqd", p, v).transpose(0, 2, 1, 3).reshape(B, S, E)
    att = att @ raw["out_proj_weight"].T
    x = x + att
    xn2 = ln(x, raw["ln2_w"], raw["ln2_b"])
    h = jax.nn.gelu(xn2 @ raw["w1"].T + raw["b1"], approximate=False)
    h = jax.nn.gelu(h @ raw["w2"].T + raw["b2"], approximate=False)
    h = h @ raw["w3"].T + raw["b3"]
    return x + h


# ------------------------------- main ----------------------------------------
if __name__ == "__main__":
    key = jax.random.PRNGKey(0)
    ks = jax.random.split(key, 16)

    def rnd(k, shape, scale=0.05):
        return jax.random.normal(k, shape, dtype=jnp.float32) * scale

    # Raw parameters in PyTorch layout:
    #   nn.MultiheadAttention(E, H, bias=False): in_proj_weight (3E, E),
    #   out_proj.weight (E, E), no attention biases (module default bias=False).
    #   nn.Linear weights are (out, in) with bias (out,); nn.LayerNorm weight/bias (E,).
    raw = {
        "in_proj_weight": rnd(ks[0], (3 * E, E)),
        "out_proj_weight": rnd(ks[1], (E, E)),
        "ln1_w": 1.0 + rnd(ks[9], (E,), 0.02), "ln1_b": rnd(ks[10], (E,), 0.02),
        "ln2_w": 1.0 + rnd(ks[11], (E,), 0.02), "ln2_b": rnd(ks[12], (E,), 0.02),
        "w1": rnd(ks[2], (E, E)), "b1": rnd(ks[3], (E,)),
        "w2": rnd(ks[4], (E, E)), "b2": rnd(ks[5], (E,)),
        "w3": rnd(ks[6], (E, E)), "b3": rnd(ks[7], (E,)),
    }

    x = jax.random.normal(ks[8], (B, S, E), dtype=jnp.float32)

    prm = prepare_params(raw)   # one-time: transpose, fold scale, bf16 cast

    out = jax.block_until_ready(transformer_block(x, prm))
    ref = jax.block_until_ready(transformer_block_ref(x, raw))

    # Tolerance covers bf16 weight-matmul operands (f32 accumulation); attention
    # internals and LN/softmax/GELU math are exact f32.
    np.testing.assert_allclose(np.asarray(out), np.asarray(ref), atol=1e-2, rtol=1e-2)

    print("KERNEL_OK")
</pallas_src>

<mosaic_0001>
module attributes {stable_mosaic.version = 11 : i64} {
  func.func @kernel(%arg0: i32, %arg1: memref<16x32xf32, #tpu.memory_space<vmem>>, %arg2: memref<32x96xbf16, #tpu.memory_space<vmem>>, %arg3: memref<32x32xbf16, #tpu.memory_space<vmem>>, %arg4: memref<1x32xf32, #tpu.memory_space<vmem>>, %arg5: memref<1x32xf32, #tpu.memory_space<vmem>>, %arg6: memref<1x32xf32, #tpu.memory_space<vmem>>, %arg7: memref<1x32xf32, #tpu.memory_space<vmem>>, %arg8: memref<32x32xbf16, #tpu.memory_space<vmem>>, %arg9: memref<1x32xf32, #tpu.memory_space<vmem>>, %arg10: memref<32x32xbf16, #tpu.memory_space<vmem>>, %arg11: memref<1x32xf32, #tpu.memory_space<vmem>>, %arg12: memref<32x32xbf16, #tpu.memory_space<vmem>>, %arg13: memref<1x32xf32, #tpu.memory_space<vmem>>, %arg14: memref<16x32xf32, #tpu.memory_space<vmem>>) attributes {dimension_semantics = [#tpu.dimension_semantics<arbitrary>], iteration_bounds = array<i64: 1>, scalar_prefetch = 0 : i64, scratch_operands = 0 : i64, tpu.core_type = #tpu.core_type<tc>, window_params = [{transform_indices = @transform_0, window_bounds = array<i64: 16, 32>}, {pipeline_mode = #tpu.pipeline_mode<synchronous>, transform_indices = @transform_1, window_bounds = array<i64: 32, 96>}, {pipeline_mode = #tpu.pipeline_mode<synchronous>, transform_indices = @transform_2, window_bounds = array<i64: 32, 32>}, {pipeline_mode = #tpu.pipeline_mode<synchronous>, transform_indices = @transform_3, window_bounds = array<i64: 1, 32>}, {pipeline_mode = #tpu.pipeline_mode<synchronous>, transform_indices = @transform_4, window_bounds = array<i64: 1, 32>}, {pipeline_mode = #tpu.pipeline_mode<synchronous>, transform_indices = @transform_5, window_bounds = array<i64: 1, 32>}, {pipeline_mode = #tpu.pipeline_mode<synchronous>, transform_indices = @transform_6, window_bounds = array<i64: 1, 32>}, {pipeline_mode = #tpu.pipeline_mode<synchronous>, transform_indices = @transform_7, window_bounds = array<i64: 32, 32>}, {pipeline_mode = #tpu.pipeline_mode<synchronous>, transform_indices = @transform_8, window_bounds = array<i64: 1, 32>}, {pipeline_mode = #tpu.pipeline_mode<synchronous>, transform_indices = @transform_9, window_bounds = array<i64: 32, 32>}, {pipeline_mode = #tpu.pipeline_mode<synchronous>, transform_indices = @transform_10, window_bounds = array<i64: 1, 32>}, {pipeline_mode = #tpu.pipeline_mode<synchronous>, transform_indices = @transform_11, window_bounds = array<i64: 32, 32>}, {pipeline_mode = #tpu.pipeline_mode<synchronous>, transform_indices = @transform_12, window_bounds = array<i64: 1, 32>}, {transform_indices = @transform_13, window_bounds = array<i64: 16, 32>}]} {
    %c0 = arith.constant 0 : index
    %c0_0 = arith.constant 0 : index
    %0 = vector.load %arg1[%c0, %c0_0] : memref<16x32xf32, #tpu.memory_space<vmem>>, vector<16x32xf32>
    %c0_1 = arith.constant 0 : index
    %c0_2 = arith.constant 0 : index
    %1 = vector.load %arg4[%c0_1, %c0_2] : memref<1x32xf32, #tpu.memory_space<vmem>>, vector<1x32xf32>
    %c0_3 = arith.constant 0 : index
    %c0_4 = arith.constant 0 : index
    %2 = vector.load %arg5[%c0_3, %c0_4] : memref<1x32xf32, #tpu.memory_space<vmem>>, vector<1x32xf32>
    %cst = arith.constant dense<0.000000e+00> : vector<16xf32>
    %3 = vector.multi_reduction <add>, %0, %cst [1] : vector<16x32xf32> to vector<16xf32>
    %4 = vector.shape_cast %3 : vector<16xf32> to vector<16x1xf32>
    %cst_5 = arith.constant 3.200000e+01 : f32
    %5 = vector.broadcast %cst_5 : f32 to vector<16x1xf32>
    %6 = arith.divf %4, %5 : vector<16x1xf32>
    %7 = vector.broadcast %6 : vector<16x1xf32> to vector<16x32xf32>
    %8 = arith.subf %0, %7 : vector<16x32xf32>
    %9 = arith.mulf %8, %8 : vector<16x32xf32>
    %cst_6 = arith.constant dense<0.000000e+00> : vector<16xf32>
    %10 = vector.multi_reduction <add>, %9, %cst_6 [1] : vector<16x32xf32> to vector<16xf32>
    %11 = vector.shape_cast %10 : vector<16xf32> to vector<16x1xf32>
    %cst_7 = arith.constant 3.200000e+01 : f32
    %12 = vector.broadcast %cst_7 : f32 to vector<16x1xf32>
    %13 = arith.divf %11, %12 : vector<16x1xf32>
    %14 = vector.broadcast %6 : vector<16x1xf32> to vector<16x32xf32>
    %15 = arith.subf %0, %14 : vector<16x32xf32>
    %cst_8 = arith.constant 9.99999974E-6 : f32
    %16 = vector.broadcast %cst_8 : f32 to vector<16x1xf32>
    %17 = arith.addf %13, %16 : vector<16x1xf32>
    %18 = math.rsqrt %17 : vector<16x1xf32>
    %19 = vector.broadcast %18 : vector<16x1xf32> to vector<16x32xf32>
    %20 = arith.mulf %15, %19 : vector<16x32xf32>
    %21 = vector.broadcast %1 : vector<1x32xf32> to vector<16x32xf32>
    %22 = arith.mulf %20, %21 : vector<16x32xf32>
    %23 = vector.broadcast %2 : vector<1x32xf32> to vector<16x32xf32>
    %24 = arith.addf %22, %23 : vector<16x32xf32>
    %25 = arith.truncf %24 : vector<16x32xf32> to vector<16x32xbf16>
    %c0_9 = arith.constant 0 : index
    %c0_10 = arith.constant 0 : index
    %26 = vector.load %arg2[%c0_9, %c0_10] : memref<32x96xbf16, #tpu.memory_space<vmem>>, vector<32x96xbf16>
    %cst_11 = arith.constant dense<0.000000e+00> : vector<16x96xf32>
    %27 = tpu.matmul %25, %26, %cst_11 {dimension_numbers = #tpu.dot_dimension_numbers<[1], [0], [0], [1], [0, 0, 1, 1], [], []>} : vector<16x32xbf16>, vector<32x96xbf16>, vector<16x96xf32> -> vector<16x96xf32>
    %28 = vector.extract_strided_slice %27 {offsets = [0, 0], sizes = [8, 8], strides = [1, 1]} : vector<16x96xf32> to vector<8x8xf32>
    %29 = vector.extract_strided_slice %27 {offsets = [0, 32], sizes = [8, 8], strides = [1, 1]} : vector<16x96xf32> to vector<8x8xf32>
    %30 = vector.extract_strided_slice %27 {offsets = [0, 64], sizes = [8, 8], strides = [1, 1]} : vector<16x96xf32> to vector<8x8xf32>
    %cst_12 = arith.constant dense<0.000000e+00> : vector<8x8xf32>
    %31 = tpu.matmul %28, %29, %cst_12 {dimension_numbers = #tpu.dot_dimension_numbers<[1], [1], [0], [0], [0, 0, 1, 0], [], []>} : vector<8x8xf32>, vector<8x8xf32>, vector<8x8xf32> -> vector<8x8xf32>
    %cst_13 = arith.constant dense<0xFF800000> : vector<8xf32>
    %32 = vector.multi_reduction <maximumf>, %31, %cst_13 [1] : vector<8x8xf32> to vector<8xf32>
    %33 = vector.shape_cast %32 : vector<8xf32> to vector<8x1xf32>
    %34 = vector.broadcast %33 : vector<8x1xf32> to vector<8x8xf32>
    %35 = arith.subf %31, %34 : vector<8x8xf32>
    %36 = math.exp %35 : vector<8x8xf32>
    %cst_14 = arith.constant dense<0.000000e+00> : vector<8xf32>
    %37 = vector.multi_reduction <add>, %36, %cst_14 [1] : vector<8x8xf32> to vector<8xf32>
    %38 = vector.shape_cast %37 : vector<8xf32> to vector<8x1xf32>
    %39 = vector.broadcast %38 : vector<8x1xf32> to vector<8x8xf32>
    %40 = arith.divf %36, %39 : vector<8x8xf32>
    %cst_15 = arith.constant dense<0.000000e+00> : vector<8x8xf32>
    %41 = tpu.matmul %40, %30, %cst_15 {dimension_numbers = #tpu.dot_dimension_numbers<[1], [0], [0], [1], [0, 0, 1, 1], [], []>} : vector<8x8xf32>, vector<8x8xf32>, vector<8x8xf32> -> vector<8x8xf32>
    %42 = vector.extract_strided_slice %27 {offsets = [0, 8], sizes = [8, 8], strides = [1, 1]} : vector<16x96xf32> to vector<8x8xf32>
    %43 = vector.extract_strided_slice %27 {offsets = [0, 40], sizes = [8, 8], strides = [1, 1]} : vector<16x96xf32> to vector<8x8xf32>
    %44 = vector.extract_strided_slice %27 {offsets = [0, 72], sizes = [8, 8], strides = [1, 1]} : vector<16x96xf32> to vector<8x8xf32>
    %cst_16 = arith.constant dense<0.000000e+00> : vector<8x8xf32>
    %45 = tpu.matmul %42, %43, %cst_16 {dimension_numbers = #tpu.dot_dimension_numbers<[1], [1], [0], [0], [0, 0, 1, 0], [], []>} : vector<8x8xf32>, vector<8x8xf32>, vector<8x8xf32> -> vector<8x8xf32>
    %cst_17 = arith.constant dense<0xFF800000> : vector<8xf32>
    %46 = vector.multi_reduction <maximumf>, %45, %cst_17 [1] : vector<8x8xf32> to vector<8xf32>
    %47 = vector.shape_cast %46 : vector<8xf32> to vector<8x1xf32>
    %48 = vector.broadcast %47 : vector<8x1xf32> to vector<8x8xf32>
    %49 = arith.subf %45, %48 : vector<8x8xf32>
    %50 = math.exp %49 : vector<8x8xf32>
    %cst_18 = arith.constant dense<0.000000e+00> : vector<8xf32>
    %51 = vector.multi_reduction <add>, %50, %cst_18 [1] : vector<8x8xf32> to vector<8xf32>
    %52 = vector.shape_cast %51 : vector<8xf32> to vector<8x1xf32>
    %53 = vector.broadcast %52 : vector<8x1xf32> to vector<8x8xf32>
    %54 = arith.divf %50, %53 : vector<8x8xf32>
    %cst_19 = arith.constant dense<0.000000e+00> : vector<8x8xf32>
    %55 = tpu.matmul %54, %44, %cst_19 {dimension_numbers = #tpu.dot_dimension_numbers<[1], [0], [0], [1], [0, 0, 1, 1], [], []>} : vector<8x8xf32>, vector<8x8xf32>, vector<8x8xf32> -> vector<8x8xf32>
    %56 = vector.extract_strided_slice %27 {offsets = [0, 16], sizes = [8, 8], strides = [1, 1]} : vector<16x96xf32> to vector<8x8xf32>
    %57 = vector.extract_strided_slice %27 {offsets = [0, 48], sizes = [8, 8], strides = [1, 1]} : vector<16x96xf32> to vector<8x8xf32>
    %58 = vector.extract_strided_slice %27 {offsets = [0, 80], sizes = [8, 8], strides = [1, 1]} : vector<16x96xf32> to vector<8x8xf32>
    %cst_20 = arith.constant dense<0.000000e+00> : vector<8x8xf32>
    %59 = tpu.matmul %56, %57, %cst_20 {dimension_numbers = #tpu.dot_dimension_numbers<[1], [1], [0], [0], [0, 0, 1, 0], [], []>} : vector<8x8xf32>, vector<8x8xf32>, vector<8x8xf32> -> vector<8x8xf32>
    %cst_21 = arith.constant dense<0xFF800000> : vector<8xf32>
    %60 = vector.multi_reduction <maximumf>, %59, %cst_21 [1] : vector<8x8xf32> to vector<8xf32>
    %61 = vector.shape_cast %60 : vector<8xf32> to vector<8x1xf32>
    %62 = vector.broadcast %61 : vector<8x1xf32> to vector<8x8xf32>
    %63 = arith.subf %59, %62 : vector<8x8xf32>
    %64 = math.exp %63 : vector<8x8xf32>
    %cst_22 = arith.constant dense<0.000000e+00> : vector<8xf32>
    %65 = vector.multi_reduction <add>, %64, %cst_22 [1] : vector<8x8xf32> to vector<8xf32>
    %66 = vector.shape_cast %65 : vector<8xf32> to vector<8x1xf32>
    %67 = vector.broadcast %66 : vector<8x1xf32> to vector<8x8xf32>
    %68 = arith.divf %64, %67 : vector<8x8xf32>
    %cst_23 = arith.constant dense<0.000000e+00> : vector<8x8xf32>
    %69 = tpu.matmul %68, %58, %cst_23 {dimension_numbers = #tpu.dot_dimension_numbers<[1], [0], [0], [1], [0, 0, 1, 1], [], []>} : vector<8x8xf32>, vector<8x8xf32>, vector<8x8xf32> -> vector<8x8xf32>
    %70 = vector.extract_strided_slice %27 {offsets = [0, 24], sizes = [8, 8], strides = [1, 1]} : vector<16x96xf32> to vector<8x8xf32>
    %71 = vector.extract_strided_slice %27 {offsets = [0, 56], sizes = [8, 8], strides = [1, 1]} : vector<16x96xf32> to vector<8x8xf32>
    %72 = vector.extract_strided_slice %27 {offsets = [0, 88], sizes = [8, 8], strides = [1, 1]} : vector<16x96xf32> to vector<8x8xf32>
    %cst_24 = arith.constant dense<0.000000e+00> : vector<8x8xf32>
    %73 = tpu.matmul %70, %71, %cst_24 {dimension_numbers = #tpu.dot_dimension_numbers<[1], [1], [0], [0], [0, 0, 1, 0], [], []>} : vector<8x8xf32>, vector<8x8xf32>, vector<8x8xf32> -> vector<8x8xf32>
    %cst_25 = arith.constant dense<0xFF800000> : vector<8xf32>
    %74 = vector.multi_reduction <maximumf>, %73, %cst_25 [1] : vector<8x8xf32> to vector<8xf32>
    %75 = vector.shape_cast %74 : vector<8xf32> to vector<8x1xf32>
    %76 = vector.broadcast %75 : vector<8x1xf32> to vector<8x8xf32>
    %77 = arith.subf %73, %76 : vector<8x8xf32>
    %78 = math.exp %77 : vector<8x8xf32>
    %cst_26 = arith.constant dense<0.000000e+00> : vector<8xf32>
    %79 = vector.multi_reduction <add>, %78, %cst_26 [1] : vector<8x8xf32> to vector<8xf32>
    %80 = vector.shape_cast %79 : vector<8xf32> to vector<8x1xf32>
    %81 = vector.broadcast %80 : vector<8x1xf32> to vector<8x8xf32>
    %82 = arith.divf %78, %81 : vector<8x8xf32>
    %cst_27 = arith.constant dense<0.000000e+00> : vector<8x8xf32>
    %83 = tpu.matmul %82, %72, %cst_27 {dimension_numbers = #tpu.dot_dimension_numbers<[1], [0], [0], [1], [0, 0, 1, 1], [], []>} : vector<8x8xf32>, vector<8x8xf32>, vector<8x8xf32> -> vector<8x8xf32>
    %84 = tpu.concatenate %41, %55, %69, %83 in 1 : vector<8x8xf32>, vector<8x8xf32>, vector<8x8xf32>, vector<8x8xf32> -> vector<8x32xf32>
    %85 = vector.extract_strided_slice %27 {offsets = [8, 0], sizes = [8, 8], strides = [1, 1]} : vector<16x96xf32> to vector<8x8xf32>
    %86 = vector.extract_strided_slice %27 {offsets = [8, 32], sizes = [8, 8], strides = [1, 1]} : vector<16x96xf32> to vector<8x8xf32>
    %87 = vector.extract_strided_slice %27 {offsets = [8, 64], sizes = [8, 8], strides = [1, 1]} : vector<16x96xf32> to vector<8x8xf32>
    %cst_28 = arith.constant dense<0.000000e+00> : vector<8x8xf32>
    %88 = tpu.matmul %85, %86, %cst_28 {dimension_numbers = #tpu.dot_dimension_numbers<[1], [1], [0], [0], [0, 0, 1, 0], [], []>} : vector<8x8xf32>, vector<8x8xf32>, vector<8x8xf32> -> vector<8x8xf32>
    %cst_29 = arith.constant dense<0xFF800000> : vector<8xf32>
    %89 = vector.multi_reduction <maximumf>, %88, %cst_29 [1] : vector<8x8xf32> to vector<8xf32>
    %90 = vector.shape_cast %89 : vector<8xf32> to vector<8x1xf32>
    %91 = vector.broadcast %90 : vector<8x1xf32> to vector<8x8xf32>
    %92 = arith.subf %88, %91 : vector<8x8xf32>
    %93 = math.exp %92 : vector<8x8xf32>
    %cst_30 = arith.constant dense<0.000000e+00> : vector<8xf32>
    %94 = vector.multi_reduction <add>, %93, %cst_30 [1] : vector<8x8xf32> to vector<8xf32>
    %95 = vector.shape_cast %94 : vector<8xf32> to vector<8x1xf32>
    %96 = vector.broadcast %95 : vector<8x1xf32> to vector<8x8xf32>
    %97 = arith.divf %93, %96 : vector<8x8xf32>
    %cst_31 = arith.constant dense<0.000000e+00> : vector<8x8xf32>
    %98 = tpu.matmul %97, %87, %cst_31 {dimension_numbers = #tpu.dot_dimension_numbers<[1], [0], [0], [1], [0, 0, 1, 1], [], []>} : vector<8x8xf32>, vector<8x8xf32>, vector<8x8xf32> -> vector<8x8xf32>
    %99 = vector.extract_strided_slice %27 {offsets = [8, 8], sizes = [8, 8], strides = [1, 1]} : vector<16x96xf32> to vector<8x8xf32>
    %100 = vector.extract_strided_slice %27 {offsets = [8, 40], sizes = [8, 8], strides = [1, 1]} : vector<16x96xf32> to vector<8x8xf32>
    %101 = vector.extract_strided_slice %27 {offsets = [8, 72], sizes = [8, 8], strides = [1, 1]} : vector<16x96xf32> to vector<8x8xf32>
    %cst_32 = arith.constant dense<0.000000e+00> : vector<8x8xf32>
    %102 = tpu.matmul %99, %100, %cst_32 {dimension_numbers = #tpu.dot_dimension_numbers<[1], [1], [0], [0], [0, 0, 1, 0], [], []>} : vector<8x8xf32>, vector<8x8xf32>, vector<8x8xf32> -> vector<8x8xf32>
    %cst_33 = arith.constant dense<0xFF800000> : vector<8xf32>
    %103 = vector.multi_reduction <maximumf>, %102, %cst_33 [1] : vector<8x8xf32> to vector<8xf32>
    %104 = vector.shape_cast %103 : vector<8xf32> to vector<8x1xf32>
    %105 = vector.broadcast %104 : vector<8x1xf32> to vector<8x8xf32>
    %106 = arith.subf %102, %105 : vector<8x8xf32>
    %107 = math.exp %106 : vector<8x8xf32>
    %cst_34 = arith.constant dense<0.000000e+00> : vector<8xf32>
    %108 = vector.multi_reduction <add>, %107, %cst_34 [1] : vector<8x8xf32> to vector<8xf32>
    %109 = vector.shape_cast %108 : vector<8xf32> to vector<8x1xf32>
    %110 = vector.broadcast %109 : vector<8x1xf32> to vector<8x8xf32>
    %111 = arith.divf %107, %110 : vector<8x8xf32>
    %cst_35 = arith.constant dense<0.000000e+00> : vector<8x8xf32>
    %112 = tpu.matmul %111, %101, %cst_35 {dimension_numbers = #tpu.dot_dimension_numbers<[1], [0], [0], [1], [0, 0, 1, 1], [], []>} : vector<8x8xf32>, vector<8x8xf32>, vector<8x8xf32> -> vector<8x8xf32>
    %113 = vector.extract_strided_slice %27 {offsets = [8, 16], sizes = [8, 8], strides = [1, 1]} : vector<16x96xf32> to vector<8x8xf32>
    %114 = vector.extract_strided_slice %27 {offsets = [8, 48], sizes = [8, 8], strides = [1, 1]} : vector<16x96xf32> to vector<8x8xf32>
    %115 = vector.extract_strided_slice %27 {offsets = [8, 80], sizes = [8, 8], strides = [1, 1]} : vector<16x96xf32> to vector<8x8xf32>
    %cst_36 = arith.constant dense<0.000000e+00> : vector<8x8xf32>
    %116 = tpu.matmul %113, %114, %cst_36 {dimension_numbers = #tpu.dot_dimension_numbers<[1], [1], [0], [0], [0, 0, 1, 0], [], []>} : vector<8x8xf32>, vector<8x8xf32>, vector<8x8xf32> -> vector<8x8xf32>
    %cst_37 = arith.constant dense<0xFF800000> : vector<8xf32>
    %117 = vector.multi_reduction <maximumf>, %116, %cst_37 [1] : vector<8x8xf32> to vector<8xf32>
    %118 = vector.shape_cast %117 : vector<8xf32> to vector<8x1xf32>
    %119 = vector.broadcast %118 : vector<8x1xf32> to vector<8x8xf32>
    %120 = arith.subf %116, %119 : vector<8x8xf32>
    %121 = math.exp %120 : vector<8x8xf32>
    %cst_38 = arith.constant dense<0.000000e+00> : vector<8xf32>
    %122 = vector.multi_reduction <add>, %121, %cst_38 [1] : vector<8x8xf32> to vector<8xf32>
    %123 = vector.shape_cast %122 : vector<8xf32> to vector<8x1xf32>
    %124 = vector.broadcast %123 : vector<8x1xf32> to vector<8x8xf32>
    %125 = arith.divf %121, %124 : vector<8x8xf32>
    %cst_39 = arith.constant dense<0.000000e+00> : vector<8x8xf32>
    %126 = tpu.matmul %125, %115, %cst_39 {dimension_numbers = #tpu.dot_dimension_numbers<[1], [0], [0], [1], [0, 0, 1, 1], [], []>} : vector<8x8xf32>, vector<8x8xf32>, vector<8x8xf32> -> vector<8x8xf32>
    %127 = vector.extract_strided_slice %27 {offsets = [8, 24], sizes = [8, 8], strides = [1, 1]} : vector<16x96xf32> to vector<8x8xf32>
    %128 = vector.extract_strided_slice %27 {offsets = [8, 56], sizes = [8, 8], strides = [1, 1]} : vector<16x96xf32> to vector<8x8xf32>
    %129 = vector.extract_strided_slice %27 {offsets = [8, 88], sizes = [8, 8], strides = [1, 1]} : vector<16x96xf32> to vector<8x8xf32>
    %cst_40 = arith.constant dense<0.000000e+00> : vector<8x8xf32>
    %130 = tpu.matmul %127, %128, %cst_40 {dimension_numbers = #tpu.dot_dimension_numbers<[1], [1], [0], [0], [0, 0, 1, 0], [], []>} : vector<8x8xf32>, vector<8x8xf32>, vector<8x8xf32> -> vector<8x8xf32>
    %cst_41 = arith.constant dense<0xFF800000> : vector<8xf32>
    %131 = vector.multi_reduction <maximumf>, %130, %cst_41 [1] : vector<8x8xf32> to vector<8xf32>
    %132 = vector.shape_cast %131 : vector<8xf32> to vector<8x1xf32>
    %133 = vector.broadcast %132 : vector<8x1xf32> to vector<8x8xf32>
    %134 = arith.subf %130, %133 : vector<8x8xf32>
    %135 = math.exp %134 : vector<8x8xf32>
    %cst_42 = arith.constant dense<0.000000e+00> : vector<8xf32>
    %136 = vector.multi_reduction <add>, %135, %cst_42 [1] : vector<8x8xf32> to vector<8xf32>
    %137 = vector.shape_cast %136 : vector<8xf32> to vector<8x1xf32>
    %138 = vector.broadcast %137 : vector<8x1xf32> to vector<8x8xf32>
    %139 = arith.divf %135, %138 : vector<8x8xf32>
    %cst_43 = arith.constant dense<0.000000e+00> : vector<8x8xf32>
    %140 = tpu.matmul %139, %129, %cst_43 {dimension_numbers = #tpu.dot_dimension_numbers<[1], [0], [0], [1], [0, 0, 1, 1], [], []>} : vector<8x8xf32>, vector<8x8xf32>, vector<8x8xf32> -> vector<8x8xf32>
    %141 = tpu.concatenate %98, %112, %126, %140 in 1 : vector<8x8xf32>, vector<8x8xf32>, vector<8x8xf32>, vector<8x8xf32> -> vector<8x32xf32>
    %142 = tpu.concatenate %84, %141 in 0 : vector<8x32xf32>, vector<8x32xf32> -> vector<16x32xf32>
    %143 = arith.truncf %142 : vector<16x32xf32> to vector<16x32xbf16>
    %c0_44 = arith.constant 0 : index
    %c0_45 = arith.constant 0 : index
    %144 = vector.load %arg3[%c0_44, %c0_45] : memref<32x32xbf16, #tpu.memory_space<vmem>>, vector<32x32xbf16>
    %cst_46 = arith.constant dense<0.000000e+00> : vector<16x32xf32>
    %145 = tpu.matmul %143, %144, %cst_46 {dimension_numbers = #tpu.dot_dimension_numbers<[1], [0], [0], [1], [0, 0, 1, 1], [], []>} : vector<16x32xbf16>, vector<32x32xbf16>, vector<16x32xf32> -> vector<16x32xf32>
    %146 = arith.addf %0, %145 : vector<16x32xf32>
    %c0_47 = arith.constant 0 : index
    %c0_48 = arith.constant 0 : index
    %147 = vector.load %arg6[%c0_47, %c0_48] : memref<1x32xf32, #tpu.memory_space<vmem>>, vector<1x32xf32>
    %c0_49 = arith.constant 0 : index
    %c0_50 = arith.constant 0 : index
    %148 = vector.load %arg7[%c0_49, %c0_50] : memref<1x32xf32, #tpu.memory_space<vmem>>, vector<1x32xf32>
    %cst_51 = arith.constant dense<0.000000e+00> : vector<16xf32>
    %149 = vector.multi_reduction <add>, %146, %cst_51 [1] : vector<16x32xf32> to vector<16xf32>
    %150 = vector.shape_cast %149 : vector<16xf32> to vector<16x1xf32>
    %cst_52 = arith.constant 3.200000e+01 : f32
    %151 = vector.broadcast %cst_52 : f32 to vector<16x1xf32>
    %152 = arith.divf %150, %151 : vector<16x1xf32>
    %153 = vector.broadcast %152 : vector<16x1xf32> to vector<16x32xf32>
    %154 = arith.subf %146, %153 : vector<16x32xf32>
    %155 = arith.mulf %154, %154 : vector<16x32xf32>
    %cst_53 = arith.constant dense<0.000000e+00> : vector<16xf32>
    %156 = vector.multi_reduction <add>, %155, %cst_53 [1] : vector<16x32xf32> to vector<16xf32>
    %157 = vector.shape_cast %156 : vector<16xf32> to vector<16x1xf32>
    %cst_54 = arith.constant 3.200000e+01 : f32
    %158 = vector.broadcast %cst_54 : f32 to vector<16x1xf32>
    %159 = arith.divf %157, %158 : vector<16x1xf32>
    %160 = vector.broadcast %152 : vector<16x1xf32> to vector<16x32xf32>
    %161 = arith.subf %146, %160 : vector<16x32xf32>
    %cst_55 = arith.constant 9.99999974E-6 : f32
    %162 = vector.broadcast %cst_55 : f32 to vector<16x1xf32>
    %163 = arith.addf %159, %162 : vector<16x1xf32>
    %164 = math.rsqrt %163 : vector<16x1xf32>
    %165 = vector.broadcast %164 : vector<16x1xf32> to vector<16x32xf32>
    %166 = arith.mulf %161, %165 : vector<16x32xf32>
    %167 = vector.broadcast %147 : vector<1x32xf32> to vector<16x32xf32>
    %168 = arith.mulf %166, %167 : vector<16x32xf32>
    %169 = vector.broadcast %148 : vector<1x32xf32> to vector<16x32xf32>
    %170 = arith.addf %168, %169 : vector<16x32xf32>
    %171 = arith.truncf %170 : vector<16x32xf32> to vector<16x32xbf16>
    %c0_56 = arith.constant 0 : index
    %c0_57 = arith.constant 0 : index
    %172 = vector.load %arg8[%c0_56, %c0_57] : memref<32x32xbf16, #tpu.memory_space<vmem>>, vector<32x32xbf16>
    %cst_58 = arith.constant dense<0.000000e+00> : vector<16x32xf32>
    %173 = tpu.matmul %171, %172, %cst_58 {dimension_numbers = #tpu.dot_dimension_numbers<[1], [0], [0], [1], [0, 0, 1, 1], [], []>} : vector<16x32xbf16>, vector<32x32xbf16>, vector<16x32xf32> -> vector<16x32xf32>
    %c0_59 = arith.constant 0 : index
    %c0_60 = arith.constant 0 : index
    %174 = vector.load %arg9[%c0_59, %c0_60] : memref<1x32xf32, #tpu.memory_space<vmem>>, vector<1x32xf32>
    %175 = vector.broadcast %174 : vector<1x32xf32> to vector<16x32xf32>
    %176 = arith.addf %173, %175 : vector<16x32xf32>
    %cst_61 = arith.constant 5.000000e-01 : f32
    %177 = vector.broadcast %cst_61 : f32 to vector<16x32xf32>
    %178 = arith.mulf %177, %176 : vector<16x32xf32>
    %cst_62 = arith.constant 0.707106769 : f32
    %179 = vector.broadcast %cst_62 : f32 to vector<16x32xf32>
    %180 = arith.mulf %176, %179 : vector<16x32xf32>
    %181 = math.erf %180 : vector<16x32xf32>
    %cst_63 = arith.constant 1.000000e+00 : f32
    %182 = vector.broadcast %cst_63 : f32 to vector<16x32xf32>
    %183 = arith.addf %182, %181 : vector<16x32xf32>
    %184 = arith.mulf %178, %183 : vector<16x32xf32>
    %185 = arith.truncf %184 : vector<16x32xf32> to vector<16x32xbf16>
    %c0_64 = arith.constant 0 : index
    %c0_65 = arith.constant 0 : index
    %186 = vector.load %arg10[%c0_64, %c0_65] : memref<32x32xbf16, #tpu.memory_space<vmem>>, vector<32x32xbf16>
    %cst_66 = arith.constant dense<0.000000e+00> : vector<16x32xf32>
    %187 = tpu.matmul %185, %186, %cst_66 {dimension_numbers = #tpu.dot_dimension_numbers<[1], [0], [0], [1], [0, 0, 1, 1], [], []>} : vector<16x32xbf16>, vector<32x32xbf16>, vector<16x32xf32> -> vector<16x32xf32>
    %c0_67 = arith.constant 0 : index
    %c0_68 = arith.constant 0 : index
    %188 = vector.load %arg11[%c0_67, %c0_68] : memref<1x32xf32, #tpu.memory_space<vmem>>, vector<1x32xf32>
    %189 = vector.broadcast %188 : vector<1x32xf32> to vector<16x32xf32>
    %190 = arith.addf %187, %189 : vector<16x32xf32>
    %cst_69 = arith.constant 5.000000e-01 : f32
    %191 = vector.broadcast %cst_69 : f32 to vector<16x32xf32>
    %192 = arith.mulf %191, %190 : vector<16x32xf32>
    %cst_70 = arith.constant 0.707106769 : f32
    %193 = vector.broadcast %cst_70 : f32 to vector<16x32xf32>
    %194 = arith.mulf %190, %193 : vector<16x32xf32>
    %195 = math.erf %194 : vector<16x32xf32>
    %cst_71 = arith.constant 1.000000e+00 : f32
    %196 = vector.broadcast %cst_71 : f32 to vector<16x32xf32>
    %197 = arith.addf %196, %195 : vector<16x32xf32>
    %198 = arith.mulf %192, %197 : vector<16x32xf32>
    %199 = arith.truncf %198 : vector<16x32xf32> to vector<16x32xbf16>
    %c0_72 = arith.constant 0 : index
    %c0_73 = arith.constant 0 : index
    %200 = vector.load %arg12[%c0_72, %c0_73] : memref<32x32xbf16, #tpu.memory_space<vmem>>, vector<32x32xbf16>
    %cst_74 = arith.constant dense<0.000000e+00> : vector<16x32xf32>
    %201 = tpu.matmul %199, %200, %cst_74 {dimension_numbers = #tpu.dot_dimension_numbers<[1], [0], [0], [1], [0, 0, 1, 1], [], []>} : vector<16x32xbf16>, vector<32x32xbf16>, vector<16x32xf32> -> vector<16x32xf32>
    %c0_75 = arith.constant 0 : index
    %c0_76 = arith.constant 0 : index
    %202 = vector.load %arg13[%c0_75, %c0_76] : memref<1x32xf32, #tpu.memory_space<vmem>>, vector<1x32xf32>
    %203 = vector.broadcast %202 : vector<1x32xf32> to vector<16x32xf32>
    %204 = arith.addf %201, %203 : vector<16x32xf32>
    %205 = arith.addf %146, %204 : vector<16x32xf32>
    %c0_77 = arith.constant 0 : index
    %c0_78 = arith.constant 0 : index
    %206 = vector.load %arg14[%c0_77, %c0_78] : memref<16x32xf32, #tpu.memory_space<vmem>>, vector<16x32xf32>
    tpu.vector_store %arg14[%c0_77, %c0_78], %205 {strides = array<i32>} : memref<16x32xf32, #tpu.memory_space<vmem>>, vector<16x32xf32>,
    return
  }
  func.func @transform_0(%arg0: i32) -> (i32, i32) {
    %c0_i32 = arith.constant 0 : i32
    %c0_i32_0 = arith.constant 0 : i32
    return %arg0, %c0_i32 : i32, i32
  }
  func.func @transform_1(%arg0: i32) -> (i32, i32) {
    %c0_i32 = arith.constant 0 : i32
    %c0_i32_0 = arith.constant 0 : i32
    %c0_i32_1 = arith.constant 0 : i32
    return %c0_i32, %c0_i32_0 : i32, i32
  }
  func.func @transform_2(%arg0: i32) -> (i32, i32) {
    %c0_i32 = arith.constant 0 : i32
    %c0_i32_0 = arith.constant 0 : i32
    %c0_i32_1 = arith.constant 0 : i32
    return %c0_i32, %c0_i32_0 : i32, i32
  }
  func.func @transform_3(%arg0: i32) -> (i32, i32) {
    %c0_i32 = arith.constant 0 : i32
    %c0_i32_0 = arith.constant 0 : i32
    %c0_i32_1 = arith.constant 0 : i32
    return %c0_i32, %c0_i32_0 : i32, i32
  }
  func.func @transform_4(%arg0: i32) -> (i32, i32) {
    %c0_i32 = arith.constant 0 : i32
    %c0_i32_0 = arith.constant 0 : i32
    %c0_i32_1 = arith.constant 0 : i32
    return %c0_i32, %c0_i32_0 : i32, i32
  }
  func.func @transform_5(%arg0: i32) -> (i32, i32) {
    %c0_i32 = arith.constant 0 : i32
    %c0_i32_0 = arith.constant 0 : i32
    %c0_i32_1 = arith.constant 0 : i32
    return %c0_i32, %c0_i32_0 : i32, i32
  }
  func.func @transform_6(%arg0: i32) -> (i32, i32) {
    %c0_i32 = arith.constant 0 : i32
    %c0_i32_0 = arith.constant 0 : i32
    %c0_i32_1 = arith.constant 0 : i32
    return %c0_i32, %c0_i32_0 : i32, i32
  }
  func.func @transform_7(%arg0: i32) -> (i32, i32) {
    %c0_i32 = arith.constant 0 : i32
    %c0_i32_0 = arith.constant 0 : i32
    %c0_i32_1 = arith.constant 0 : i32
    return %c0_i32, %c0_i32_0 : i32, i32
  }
  func.func @transform_8(%arg0: i32) -> (i32, i32) {
    %c0_i32 = arith.constant 0 : i32
    %c0_i32_0 = arith.constant 0 : i32
    %c0_i32_1 = arith.constant 0 : i32
    return %c0_i32, %c0_i32_0 : i32, i32
  }
  func.func @transform_9(%arg0: i32) -> (i32, i32) {
    %c0_i32 = arith.constant 0 : i32
    %c0_i32_0 = arith.constant 0 : i32
    %c0_i32_1 = arith.constant 0 : i32
    return %c0_i32, %c0_i32_0 : i32, i32
  }
  func.func @transform_10(%arg0: i32) -> (i32, i32) {
    %c0_i32 = arith.constant 0 : i32
    %c0_i32_0 = arith.constant 0 : i32
    %c0_i32_1 = arith.constant 0 : i32
    return %c0_i32, %c0_i32_0 : i32, i32
  }
  func.func @transform_11(%arg0: i32) -> (i32, i32) {
    %c0_i32 = arith.constant 0 : i32
    %c0_i32_0 = arith.constant 0 : i32
    %c0_i32_1 = arith.constant 0 : i32
    return %c0_i32, %c0_i32_0 : i32, i32
  }
  func.func @transform_12(%arg0: i32) -> (i32, i32) {
    %c0_i32 = arith.constant 0 : i32
    %c0_i32_0 = arith.constant 0 : i32
    %c0_i32_1 = arith.constant 0 : i32
    return %c0_i32, %c0_i32_0 : i32, i32
  }
  func.func @transform_13(%arg0: i32) -> (i32, i32) {
    %c0_i32 = arith.constant 0 : i32
    %c0_i32_0 = arith.constant 0 : i32
    return %arg0, %c0_i32 : i32, i32
  }
}

</mosaic_0001>

<llo_original>
// kernel: tpu_custom_call.1
$region0: #{tpu_custom_call.1}
  #allocation0 [shape = 'u32[]', space=smem, size = 0x4, offset = 0x4, fixed_abs, tag = 'smem constant byte address 0x4 - core index']
  #allocation1 [shape = 'u32[144,128]{1,0:T(1,128)}', space=vmem, size = 0x12000, scoped, tag = 'internal scratch']
  %s0 = inlined_call_operand.hbm [shape: f32[16,32], index: 0, kind: input, shape index: {}]
  %s1 = inlined_call_operand.hbm [shape: bf16[32,96], index: 1, kind: input, shape index: {}]
  %s2 = inlined_call_operand.hbm [shape: bf16[32,32], index: 2, kind: input, shape index: {}]
  %s3 = inlined_call_operand.vmem [shape: f32[1,32], index: 3, kind: input, shape index: {}]
  %s4 = inlined_call_operand.vmem [shape: f32[1,32], index: 4, kind: input, shape index: {}]
  %s5 = inlined_call_operand.hbm [shape: f32[1,32], index: 5, kind: input, shape index: {}]
  %s6 = inlined_call_operand.hbm [shape: f32[1,32], index: 6, kind: input, shape index: {}]
  %s7 = inlined_call_operand.vmem [shape: bf16[32,32], index: 7, kind: input, shape index: {}]
  %s8 = inlined_call_operand.hbm [shape: f32[1,32], index: 8, kind: input, shape index: {}]
  %s9 = inlined_call_operand.vmem [shape: bf16[32,32], index: 9, kind: input, shape index: {}]
  %s10 = inlined_call_operand.vmem [shape: f32[1,32], index: 10, kind: input, shape index: {}]
  %s11 = inlined_call_operand.hbm [shape: bf16[32,32], index: 11, kind: input, shape index: {}]
  %s12 = inlined_call_operand.vmem [shape: f32[1,32], index: 12, kind: input, shape index: {}]
  %s13 = inlined_call_operand.hbm [shape: f32[16,32], index: 13, kind: output, shape index: {}]
  %s14 = sld [smem:[#allocation0]]
  $region90: #{tpu_custom_call.1} parent=0
    _
  %s16 = ssub.s32 1, %s14
  %s17 = scalar_select 0, %s16, %s14
  $region1: #{tpu_custom_call.1} parent=0
    #allocation2 [shape = 'u8[8192]{0}', space=vmem, size = 0x2000, scoped, tag = 'input window, operand 0, single buffered']
    #allocation3 [shape = 's32[1]{0}', space=sflag, size = 0x4, scoped, tag = 'scoped memory for tpu_custom_call.1']
    #allocation4 [shape = 's32[1]{0}', space=sflag, size = 0x4, scoped, tag = 'scoped memory for tpu_custom_call.1']
    #allocation5 [shape = 'u8[8192]{0}', space=vmem, size = 0x2000, scoped, tag = 'input window, operand 1, single buffered']
    #allocation6 [shape = 's32[1]{0}', space=sflag, size = 0x4, scoped, tag = 'scoped memory for tpu_custom_call.1']
    #allocation7 [shape = 'u8[8192]{0}', space=vmem, size = 0x2000, scoped, tag = 'input window, operand 2, single buffered']
    #allocation8 [shape = 'u8[512]{0}', space=vmem, size = 0x400, scoped, tag = 'input window, operand 5, single buffered']
    #allocation9 [shape = 's32[1]{0}', space=sflag, size = 0x4, scoped, tag = 'scoped memory for tpu_custom_call.1']
    #allocation10 [shape = 'u8[512]{0}', space=vmem, size = 0x400, scoped, tag = 'input window, operand 6, single buffered']
    #allocation11 [shape = 'u8[512]{0}', space=vmem, size = 0x400, scoped, tag = 'input window, operand 8, single buffered']
    #allocation12 [shape = 's32[1]{0}', space=sflag, size = 0x4, scoped, tag = 'scoped memory for tpu_custom_call.1']
    #allocation13 [shape = 'u8[8192]{0}', space=vmem, size = 0x2000, scoped, tag = 'input window, operand 11, single buffered']
    #allocation14 [shape = 'u8[8192]{0}', space=vmem, size = 0x2000, scoped, tag = 'output window, operand 0, single buffered']
    %18 = vsyncpa [#allocation3], 0
    %19 = vsyncpa [#allocation6], 0
    %20 = vsyncpa [#allocation9], 0
    %21 = vsyncpa [#allocation12], 0
    %22 = vsyncpa [#allocation4], 0
    // Predicated region
    $region2: #{tpu_custom_call.1} parent=1 // pred_check
      _
    $region3: #{tpu_custom_call.1} parent=1 // pred_check_branch
      %24 = sbr.rel (0) target = $region5
    $region4: #{tpu_custom_call.1} parent=1 // pred_region
      %s26 = ssub.s32 256, 256
      %27 = vsyncadd [#allocation3], %s26
      %s28 = sshll.u32 [#allocation2], 4
      %s29 = int_to_ptr.vmem [resolvable:$true] %s28
      %34 = dma.hbm_to_vmem [thread:$0]  %s0, 256, %s29, [#allocation3], 128, 128, 8
    $region5: #{tpu_custom_call.1} parent=1 // pred_fallthru
      _
    // Predicated region
    $region6: #{tpu_custom_call.1} parent=1 // pred_check
      _
    $region7: #{tpu_custom_call.1} parent=1 // pred_check_branch
      %36 = sbr.rel (0) target = $region9
    $region8: #{tpu_custom_call.1} parent=1 // pred_region
      %s38 = ssub.s32 256, 256
      %39 = vsyncadd [#allocation6], %s38
      %s40 = sshll.u32 [#allocation5], 4
      %s41 = int_to_ptr.vmem [resolvable:$true] %s40
      %46 = dma.hbm_to_vmem [thread:$0]  %s1, 256, %s41, [#allocation6], 64, 64, 4
    $region9: #{tpu_custom_call.1} parent=1 // pred_fallthru
      _
    // Predicated region
    $region10: #{tpu_custom_call.1} parent=1 // pred_check
      _
    $region11: #{tpu_custom_call.1} parent=1 // pred_check_branch
      %48 = sbr.rel (0) target = $region13
    $region12: #{tpu_custom_call.1} parent=1 // pred_region
      %s50 = ssub.s32 256, 256
      %51 = vsyncadd [#allocation6], %s50
      %s52 = sshll.u32 [#allocation7], 4
      %s53 = int_to_ptr.vmem [resolvable:$true] %s52
      %58 = dma.hbm_to_vmem [thread:$0]  %s2, 256, %s53, [#allocation6], 64, 64, 4
    $region13: #{tpu_custom_call.1} parent=1 // pred_fallthru
      _
    // Predicated region
    $region14: #{tpu_custom_call.1} parent=1 // pred_check
      _
    $region15: #{tpu_custom_call.1} parent=1 // pred_check_branch
      %60 = sbr.rel (0) target = $region17
    $region16: #{tpu_custom_call.1} parent=1 // pred_region
      _
    $region17: #{tpu_custom_call.1} parent=1 // pred_fallthru
      _
    // Predicated region
    $region18: #{tpu_custom_call.1} parent=1 // pred_check
      _
    $region19: #{tpu_custom_call.1} parent=1 // pred_check_branch
      %62 = sbr.rel (0) target = $region21
    $region20: #{tpu_custom_call.1} parent=1 // pred_region
      _
    $region21: #{tpu_custom_call.1} parent=1 // pred_fallthru
      _
    // Predicated region
    $region22: #{tpu_custom_call.1} parent=1 // pred_check
      _
    $region23: #{tpu_custom_call.1} parent=1 // pred_check_branch
      %64 = sbr.rel (0) target = $region25
    $region24: #{tpu_custom_call.1} parent=1 // pred_region
      %s66 = ssub.s32 16, 16
      %67 = vsyncadd [#allocation9], %s66
      %s69 = sshll.u32 [#allocation8], 4
      %s70 = int_to_ptr.vmem [resolvable:$true] %s69
      %72 = dma.hbm_to_vmem [thread:$0]  %s5, 16, %s70, [#allocation9]
    $region25: #{tpu_custom_call.1} parent=1 // pred_fallthru
      _
    // Predicated region
    $region26: #{tpu_custom_call.1} parent=1 // pred_check
      _
    $region27: #{tpu_custom_call.1} parent=1 // pred_check_branch
      %74 = sbr.rel (0) target = $region29
    $region28: #{tpu_custom_call.1} parent=1 // pred_region
      %s76 = ssub.s32 16, 16
      %77 = vsyncadd [#allocation9], %s76
      %s79 = sshll.u32 [#allocation10], 4
      %s80 = int_to_ptr.vmem [resolvable:$true] %s79
      %82 = dma.hbm_to_vmem [thread:$0]  %s6, 16, %s80, [#allocation9]
    $region29: #{tpu_custom_call.1} parent=1 // pred_fallthru
      _
    // Predicated region
    $region30: #{tpu_custom_call.1} parent=1 // pred_check
      _
    $region31: #{tpu_custom_call.1} parent=1 // pred_check_branch
      %84 = sbr.rel (0) target = $region33
    $region32: #{tpu_custom_call.1} parent=1 // pred_region
      _
    $region33: #{tpu_custom_call.1} parent=1 // pred_fallthru
      _
    // Predicated region
    $region34: #{tpu_custom_call.1} parent=1 // pred_check
      _
    $region35: #{tpu_custom_call.1} parent=1 // pred_check_branch
      %86 = sbr.rel (0) target = $region37
    $region36: #{tpu_custom_call.1} parent=1 // pred_region
      %s88 = ssub.s32 16, 16
      %89 = vsyncadd [#allocation12], %s88
      %s91 = sshll.u32 [#allocation11], 4
      %s92 = int_to_ptr.vmem [resolvable:$true] %s91
      %94 = dma.hbm_to_vmem [thread:$0]  %s8, 16, %s92, [#allocation12]
    $region37: #{tpu_custom_call.1} parent=1 // pred_fallthru
      _
    // Predicated region
    $region38: #{tpu_custom_call.1} parent=1 // pred_check
      _
    $region39: #{tpu_custom_call.1} parent=1 // pred_check_branch
      %96 = sbr.rel (0) target = $region41
    $region40: #{tpu_custom_call.1} parent=1 // pred_region
      _
    $region41: #{tpu_custom_call.1} parent=1 // pred_fallthru
      _
    // Predicated region
    $region42: #{tpu_custom_call.1} parent=1 // pred_check
      _
    $region43: #{tpu_custom_call.1} parent=1 // pred_check_branch
      %98 = sbr.rel (0) target = $region45
    $region44: #{tpu_custom_call.1} parent=1 // pred_region
      _
    $region45: #{tpu_custom_call.1} parent=1 // pred_fallthru
      _
    // Predicated region
    $region46: #{tpu_custom_call.1} parent=1 // pred_check
      _
    $region47: #{tpu_custom_call.1} parent=1 // pred_check_branch
      %100 = sbr.rel (0) target = $region49
    $region48: #{tpu_custom_call.1} parent=1 // pred_region
      %s102 = ssub.s32 256, 256
      %103 = vsyncadd [#allocation12], %s102
      %s104 = sshll.u32 [#allocation13], 4
      %s105 = int_to_ptr.vmem [resolvable:$true] %s104
      %110 = dma.hbm_to_vmem [thread:$0]  %s11, 256, %s105, [#allocation12], 64, 64, 4
    $region49: #{tpu_custom_call.1} parent=1 // pred_fallthru
      _
    // Predicated region
    $region50: #{tpu_custom_call.1} parent=1 // pred_check
      _
    $region51: #{tpu_custom_call.1} parent=1 // pred_check_branch
      %112 = sbr.rel (0) target = $region53
    $region52: #{tpu_custom_call.1} parent=1 // pred_region
      _
    $region53: #{tpu_custom_call.1} parent=1 // pred_fallthru
      _
    // Predicated region
    $region54: #{tpu_custom_call.1} parent=1 // pred_check
      _
    $region55: #{tpu_custom_call.1} parent=1 // pred_check_branch
      %114 = sbr.rel (0) target = $region57
    $region56: #{tpu_custom_call.1} parent=1 // pred_region
      %115 = dma.done [#allocation3], 256
    $region57: #{tpu_custom_call.1} parent=1 // pred_fallthru
      _
    // Predicated region
    $region58: #{tpu_custom_call.1} parent=1 // pred_check
      _
    $region59: #{tpu_custom_call.1} parent=1 // pred_check_branch
      %117 = sbr.rel (0) target = $region61
    $region60: #{tpu_custom_call.1} parent=1 // pred_region
      %118 = dma.done [#allocation6], 256
    $region61: #{tpu_custom_call.1} parent=1 // pred_fallthru
      _
    // Predicated region
    $region62: #{tpu_custom_call.1} parent=1 // pred_check
      _
    $region63: #{tpu_custom_call.1} parent=1 // pred_check_branch
      %120 = sbr.rel (0) target = $region65
    $region64: #{tpu_custom_call.1} parent=1 // pred_region
      %121 = dma.done [#allocation6], 256
    $region65: #{tpu_custom_call.1} parent=1 // pred_fallthru
      _
    // Predicated region
    $region66: #{tpu_custom_call.1} parent=1 // pred_check
      _
    $region67: #{tpu_custom_call.1} parent=1 // pred_check_branch
      %123 = sbr.rel (0) target = $region69
    $region68: #{tpu_custom_call.1} parent=1 // pred_region
      %124 = dma.done [#allocation9], 16
    $region69: #{tpu_custom_call.1} parent=1 // pred_fallthru
      _
    // Predicated region
    $region70: #{tpu_custom_call.1} parent=1 // pred_check
      _
    $region71: #{tpu_custom_call.1} parent=1 // pred_check_branch
      %126 = sbr.rel (0) target = $region73
    $region72: #{tpu_custom_call.1} parent=1 // pred_region
      %127 = dma.done [#allocation9], 16
    $region73: #{tpu_custom_call.1} parent=1 // pred_fallthru
      _
    // Predicated region
    $region74: #{tpu_custom_call.1} parent=1 // pred_check
      _
    $region75: #{tpu_custom_call.1} parent=1 // pred_check_branch
      %129 = sbr.rel (0) target = $region77
    $region76: #{tpu_custom_call.1} parent=1 // pred_region
      %130 = dma.done [#allocation12], 16
    $region77: #{tpu_custom_call.1} parent=1 // pred_fallthru
      _
    // Predicated region
    $region78: #{tpu_custom_call.1} parent=1 // pred_check
      _
    $region79: #{tpu_custom_call.1} parent=1 // pred_check_branch
      %132 = sbr.rel (0) target = $region81
    $region80: #{tpu_custom_call.1} parent=1 // pred_region
      %133 = dma.done [#allocation12], 256
    $region81: #{tpu_custom_call.1} parent=1 // pred_fallthru
      _
    %v135 = vld [vmem:[#allocation2] sm:$0xff]
    %v136 = vld [vmem:[#allocation2 + $0x8] sm:$0xff]
    %v137 = vld [vmem:[%s3] sm:$0x1]
    %v138 = vld [vmem:[%s4] sm:$0x1]
    %vm139 = vcmask 261120
    %v140 = vsel %vm139, %v135, 0.0
    %141 = vadd.xlane.f32.xlu0 %v140
    %v142 = vpop.xlane.xlu0 %141
    %v143 = vsel %vm139, %v136, 0.0
    %144 = vadd.xlane.f32.xlu0 %v143
    %v145 = vpop.xlane.xlu0 %144
    %v146 = vrcp.pop 32.0
    %v147 = vmul.f32 %v142, %v146
    %v148 = vmul.f32 %v145, %v146
    %v149 = vsub.f32 %v135, %v147
    %v150 = vsub.f32 %v136, %v148
    %v151 = vmul.f32 %v149, %v149
    %v152 = vmul.f32 %v150, %v150
    %v153 = vsel %vm139, %v151, 0.0
    %154 = vadd.xlane.f32.xlu0 %v153
    %v155 = vpop.xlane.xlu0 %154
    %v156 = vsel %vm139, %v152, 0.0
    %157 = vadd.xlane.f32.xlu0 %v156
    %v158 = vpop.xlane.xlu0 %157
    %v159 = vmul.f32 %v155, %v146
    %v160 = vmul.f32 %v158, %v146
    %v161 = vadd.f32 %v159, 1e-05
    %v162 = vadd.f32 %v160, 1e-05
    %v163 = vrsqrt.pop %v161
    %v164 = vrsqrt.pop %v162
    %v165 = vmul.f32 %v149, %v163
    %v166 = vmul.f32 %v150, %v164
    %v168 = vlaneseq
    %v169 = vshrl.u32 %v168, 7
    %v170 = vsub.s32 0, %v169
    %v171 = vrot.slane %v137, %v170
    %v173 = vmul.f32 %v165, %v171
    %v174 = vmul.f32 %v166, %v171
    %v176 = vlaneseq
    %v177 = vshrl.u32 %v176, 7
    %v178 = vsub.s32 0, %v177
    %v179 = vrot.slane %v138, %v178
    %v181 = vadd.f32 %v173, %v179
    %v182 = vadd.f32 %v174, %v179
    %v183 = vpack.c.bf16 %v182, %v181
    %v184 = vld [vmem:[#allocation5] sm:$0xf]
    %v185 = vld [vmem:[#allocation5 + $0x4] sm:$0xf]
    %v186 = vld [vmem:[#allocation5 + $0x8] sm:$0xf]
    %v187 = vld [vmem:[#allocation5 + $0xc] sm:$0xf]
    %v192 = vunpack.c.l.b16 %v184
    %v193 = vunpack.c.l.b16 %v185
    %v194 = vunpack.c.l.b16 %v186
    %v195 = vunpack.c.l.b16 %v187
    %v196 = vpack.c.b16 %v193, %v192
    %v197 = vpack.c.b16 %v195, %v194
    %v201 = vsel %vm139, %v183, 0
    %203 = vmatprep.subr.bf16.mxu0 0
    %204 = vmatpush1.bf16.msra.mxu0 %v196
    %205 = vmatprep.subr.bf16.mxu0 0
    %206 = vmatpush1.bf16.msra.mxu0 %v197
    %207 = vmatprep.subr.bf16.mxu0 0
    %208 = vmatpush1.bf16.msra.mxu0 0
    %209 = vmatprep.subr.bf16.mxu0 0
    %210 = vmatpush1.bf16.msra.mxu0 0
    %211 = vmatprep.subr.bf16.mxu0 0
    %212 = vmatpush1.bf16.msra.mxu0 0
    %213 = vmatprep.subr.bf16.mxu0 0
    %214 = vmatpush1.bf16.msra.mxu0 0
    %215 = vmatprep.subr.bf16.mxu0 0
    %216 = vmatpush1.bf16.msra.mxu0 0
    %217 = vmatprep.subr.bf16.mxu0 0
    %218 = vmatpush1.bf16.msra.mxu0 0
    %219 = vmatprep.subr.bf16.mxu0 0
    %220 = vmatpush1.bf16.msra.mxu0 0
    %221 = vmatprep.subr.bf16.mxu0 0
    %222 = vmatpush1.bf16.msra.mxu0 0
    %223 = vmatprep.subr.bf16.mxu0 0
    %224 = vmatpush1.bf16.msra.mxu0 0
    %225 = vmatprep.subr.bf16.mxu0 0
    %226 = vmatpush1.bf16.msra.mxu0 0
    %227 = vmatprep.subr.bf16.mxu0 0
    %228 = vmatpush1.bf16.msra.mxu0 0
    %229 = vmatprep.subr.bf16.mxu0 0
    %230 = vmatpush1.bf16.msra.mxu0 0
    %231 = vmatprep.subr.bf16.mxu0 0
    %232 = vmatpush1.bf16.msra.mxu0 0
    %233 = vmatprep.subr.bf16.mxu0 0
    %234 = vmatpush1.bf16.msra.mxu0 0
    %235 = vmatprep.mubr.bf16.mxu0 0
    %236 = vmatmul.mubr.bf16.gmra.mrb[0].mxu0 %v201
    %v237 = vpop.f32.mrb[0].mxu0
    %v238 = vadd.f32 0.0, %v237
    %v239 = vpop.f32.mrb[0].mxu0
    %v240 = vpop.f32.mrb[0].mxu0
    %v241 = vadd.f32 0.0, %v240
    %v242 = vpop.f32.mrb[0].mxu0
    %243 = vdwg.mxu0
    %245 = vrot.lane.b32.xlu0 %v238, 96
    %v246 = vpop.permute.xlu0 %245
    %vm247 = vcmask 64512
    %v248 = vsel %vm247, %v238, 0
    %v250 = vsel %vm247, %v246, 0
    %252 = vmatprep.subr.mxu0 0.0
    %253 = vmatpush1.xpose.msra.mxu0 %v250
    %254 = vmatprep.subr.mxu0 0.0
    %255 = vmatpush1.xpose.msra.mxu0 0.0
    %256 = vmatprep.subr.mxu0 0.0
    %257 = vmatpush1.xpose.msra.mxu0 0.0
    %258 = vmatprep.subr.mxu0 0.0
    %259 = vmatpush1.xpose.msra.mxu0 0.0
    %260 = vmatprep.subr.mxu0 0.0
    %261 = vmatpush1.xpose.msra.mxu0 0.0
    %262 = vmatprep.subr.mxu0 0.0
    %263 = vmatpush1.xpose.msra.mxu0 0.0
    %264 = vmatprep.subr.mxu0 0.0
    %265 = vmatpush1.xpose.msra.mxu0 0.0
    %266 = vmatprep.subr.mxu0 0.0
    %267 = vmatpush1.xpose.msra.mxu0 0.0
    %268 = vmatprep.subr.mxu0 0.0
    %269 = vmatpush1.xpose.msra.mxu0 0.0
    %270 = vmatprep.subr.mxu0 0.0
    %271 = vmatpush1.xpose.msra.mxu0 0.0
    %272 = vmatprep.subr.mxu0 0.0
    %273 = vmatpush1.xpose.msra.mxu0 0.0
    %274 = vmatprep.subr.mxu0 0.0
    %275 = vmatpush1.xpose.msra.mxu0 0.0
    %276 = vmatprep.subr.mxu0 0.0
    %277 = vmatpush1.xpose.msra.mxu0 0.0
    %278 = vmatprep.subr.mxu0 0.0
    %279 = vmatpush1.xpose.msra.mxu0 0.0
    %280 = vmatprep.subr.mxu0 0.0
    %281 = vmatpush1.xpose.msra.mxu0 0.0
    %282 = vmatprep.subr.mxu0 0.0
    %283 = vmatpush1.xpose.msra.mxu0 0.0
    %284 = vmatprep.subr.mxu0 0.0
    %285 = vmatpush1.xpose.msra.mxu0 0.0
    %286 = vmatprep.subr.mxu0 0.0
    %287 = vmatpush1.xpose.msra.mxu0 0.0
    %288 = vmatprep.subr.mxu0 0.0
    %289 = vmatpush1.xpose.msra.mxu0 0.0
    %290 = vmatprep.subr.mxu0 0.0
    %291 = vmatpush1.xpose.msra.mxu0 0.0
    %292 = vmatprep.subr.mxu0 0.0
    %293 = vmatpush1.xpose.msra.mxu0 0.0
    %294 = vmatprep.subr.mxu0 0.0
    %295 = vmatpush1.xpose.msra.mxu0 0.0
    %296 = vmatprep.subr.mxu0 0.0
    %297 = vmatpush1.xpose.msra.mxu0 0.0
    %298 = vmatprep.subr.mxu0 0.0
    %299 = vmatpush1.xpose.msra.mxu0 0.0
    %300 = vmatprep.subr.mxu0 0.0
    %301 = vmatpush1.xpose.msra.mxu0 0.0
    %302 = vmatprep.subr.mxu0 0.0
    %303 = vmatpush1.xpose.msra.mxu0 0.0
    %304 = vmatprep.subr.mxu0 0.0
    %305 = vmatpush1.xpose.msra.mxu0 0.0
    %306 = vmatprep.subr.mxu0 0.0
    %307 = vmatpush1.xpose.msra.mxu0 0.0
    %308 = vmatprep.subr.mxu0 0.0
    %309 = vmatpush1.xpose.msra.mxu0 0.0
    %310 = vmatprep.subr.mxu0 0.0
    %311 = vmatpush1.xpose.msra.mxu0 0.0
    %312 = vmatprep.subr.mxu0 0.0
    %313 = vmatpush1.xpose.msra.mxu0 0.0
    %314 = vmatprep.subr.mxu0 0.0
    %315 = vmatpush1.xpose.msra.mxu0 0.0
    %316 = vmatprep.mubr.f32.mxu0 0.0
    %317 = vmatmul.mubr.f32.gmra.mrb[0].mxu0 %v248
    %v318 = vpop.f32.mrb[0].mxu0
    %v319 = vadd.f32 0.0, %v318
    %v320 = vpop.f32.mrb[0].mxu0
    %321 = vdwg.mxu0
    %v322 = vsel %vm247, %v319, -inf
    %323 = vmax.xlane.f32.xlu0 %v322
    %v324 = vpop.xlane.xlu0 %323
    %v325 = vsub.f32 %v319, %v324
    %v326 = vmul.f32 %v325, 1.442695
    %v327 = vpow.pop %v326
    %v328 = vsel %vm247, %v327, 0.0
    %329 = vadd.xlane.f32.xlu0 %v328
    %v330 = vpop.xlane.xlu0 %329
    %v331 = vrcp.pop %v330
    %v332 = vmul.f32 %v327, %v331
    %333 = vrot.lane.b32.xlu0 %v238, 64
    %v334 = vpop.permute.xlu0 %333
    %v337 = vsel %vm247, %v332, 0
    %339 = vmatprep.subr.mxu0 0.0
    %340 = vmatpush1.msra.mxu0 %v334
    %341 = vmatprep.subr.mxu0 0.0
    %342 = vmatpush1.msra.mxu0 0.0
    %343 = vmatprep.subr.mxu0 0.0
    %344 = vmatpush1.msra.mxu0 0.0
    %345 = vmatprep.subr.mxu0 0.0
    %346 = vmatpush1.msra.mxu0 0.0
    %347 = vmatprep.subr.mxu0 0.0
    %348 = vmatpush1.msra.mxu0 0.0
    %349 = vmatprep.subr.mxu0 0.0
    %350 = vmatpush1.msra.mxu0 0.0
    %351 = vmatprep.subr.mxu0 0.0
    %352 = vmatpush1.msra.mxu0 0.0
    %353 = vmatprep.subr.mxu0 0.0
    %354 = vmatpush1.msra.mxu0 0.0
    %355 = vmatprep.subr.mxu0 0.0
    %356 = vmatpush1.msra.mxu0 0.0
    %357 = vmatprep.subr.mxu0 0.0
    %358 = vmatpush1.msra.mxu0 0.0
    %359 = vmatprep.subr.mxu0 0.0
    %360 = vmatpush1.msra.mxu0 0.0
    %361 = vmatprep.subr.mxu0 0.0
    %362 = vmatpush1.msra.mxu0 0.0
    %363 = vmatprep.subr.mxu0 0.0
    %364 = vmatpush1.msra.mxu0 0.0
    %365 = vmatprep.subr.mxu0 0.0
    %366 = vmatpush1.msra.mxu0 0.0
    %367 = vmatprep.subr.mxu0 0.0
    %368 = vmatpush1.msra.mxu0 0.0
    %369 = vmatprep.subr.mxu0 0.0
    %370 = vmatpush1.msra.mxu0 0.0
    %371 = vmatprep.subr.mxu0 0.0
    %372 = vmatpush1.msra.mxu0 0.0
    %373 = vmatprep.subr.mxu0 0.0
    %374 = vmatpush1.msra.mxu0 0.0
    %375 = vmatprep.subr.mxu0 0.0
    %376 = vmatpush1.msra.mxu0 0.0
    %377 = vmatprep.subr.mxu0 0.0
    %378 = vmatpush1.msra.mxu0 0.0
    %379 = vmatprep.subr.mxu0 0.0
    %380 = vmatpush1.msra.mxu0 0.0
    %381 = vmatprep.subr.mxu0 0.0
    %382 = vmatpush1.msra.mxu0 0.0
    %383 = vmatprep.subr.mxu0 0.0
    %384 = vmatpush1.msra.mxu0 0.0
    %385 = vmatprep.subr.mxu0 0.0
    %386 = vmatpush1.msra.mxu0 0.0
    %387 = vmatprep.subr.mxu0 0.0
    %388 = vmatpush1.msra.mxu0 0.0
    %389 = vmatprep.subr.mxu0 0.0
    %390 = vmatpush1.msra.mxu0 0.0
    %391 = vmatprep.subr.mxu0 0.0
    %392 = vmatpush1.msra.mxu0 0.0
    %393 = vmatprep.subr.mxu0 0.0
    %394 = vmatpush1.msra.mxu0 0.0
    %395 = vmatprep.subr.mxu0 0.0
    %396 = vmatpush1.msra.mxu0 0.0
    %397 = vmatprep.subr.mxu0 0.0
    %398 = vmatpush1.msra.mxu0 0.0
    %399 = vmatprep.subr.mxu0 0.0
    %400 = vmatpush1.msra.mxu0 0.0
    %401 = vmatprep.subr.mxu0 0.0
    %402 = vmatpush1.msra.mxu0 0.0
    %403 = vmatprep.mubr.f32.mxu0 0.0
    %404 = vmatmul.mubr.f32.gmra.mrb[0].mxu0 %v337
    %v405 = vpop.f32.mrb[0].mxu0
    %v406 = vadd.f32 0.0, %v405
    %v407 = vpop.f32.mrb[0].mxu0
    %408 = vdwg.mxu0
    %409 = vrot.lane.b32.xlu0 %v238, 120
    %v410 = vpop.permute.xlu0 %409
    %411 = vrot.lane.b32.xlu0 %v238, 88
    %v412 = vpop.permute.xlu0 %411
    %v413 = vsel %vm247, %v410, 0
    %v415 = vsel %vm247, %v412, 0
    %417 = vmatprep.subr.mxu0 0.0
    %418 = vmatpush1.xpose.msra.mxu0 %v415
    %419 = vmatprep.subr.mxu0 0.0
    %420 = vmatpush1.xpose.msra.mxu0 0.0
    %421 = vmatprep.subr.mxu0 0.0
    %422 = vmatpush1.xpose.msra.mxu0 0.0
    %423 = vmatprep.subr.mxu0 0.0
    %424 = vmatpush1.xpose.msra.mxu0 0.0
    %425 = vmatprep.subr.mxu0 0.0
    %426 = vmatpush1.xpose.msra.mxu0 0.0
    %427 = vmatprep.subr.mxu0 0.0
    %428 = vmatpush1.xpose.msra.mxu0 0.0
    %429 = vmatprep.subr.mxu0 0.0
    %430 = vmatpush1.xpose.msra.mxu0 0.0
    %431 = vmatprep.subr.mxu0 0.0
    %432 = vmatpush1.xpose.msra.mxu0 0.0
    %433 = vmatprep.subr.mxu0 0.0
    %434 = vmatpush1.xpose.msra.mxu0 0.0
    %435 = vmatprep.subr.mxu0 0.0
    %436 = vmatpush1.xpose.msra.mxu0 0.0
    %437 = vmatprep.subr.mxu0 0.0
    %438 = vmatpush1.xpose.msra.mxu0 0.0
    %439 = vmatprep.subr.mxu0 0.0
    %440 = vmatpush1.xpose.msra.mxu0 0.0
    %441 = vmatprep.subr.mxu0 0.0
    %442 = vmatpush1.xpose.msra.mxu0 0.0
    %443 = vmatprep.subr.mxu0 0.0
    %444 = vmatpush1.xpose.msra.mxu0 0.0
    %445 = vmatprep.subr.mxu0 0.0
    %446 = vmatpush1.xpose.msra.mxu0 0.0
    %447 = vmatprep.subr.mxu0 0.0
    %448 = vmatpush1.xpose.msra.mxu0 0.0
    %449 = vmatprep.subr.mxu0 0.0
    %450 = vmatpush1.xpose.msra.mxu0 0.0
    %451 = vmatprep.subr.mxu0 0.0
    %452 = vmatpush1.xpose.msra.mxu0 0.0
    %453 = vmatprep.subr.mxu0 0.0
    %454 = vmatpush1.xpose.msra.mxu0 0.0
    %455 = vmatprep.subr.mxu0 0.0
    %456 = vmatpush1.xpose.msra.mxu0 0.0
    %457 = vmatprep.subr.mxu0 0.0
    %458 = vmatpush1.xpose.msra.mxu0 0.0
    %459 = vmatprep.subr.mxu0 0.0
    %460 = vmatpush1.xpose.msra.mxu0 0.0
    %461 = vmatprep.subr.mxu0 0.0
    %462 = vmatpush1.xpose.msra.mxu0 0.0
    %463 = vmatprep.subr.mxu0 0.0
    %464 = vmatpush1.xpose.msra.mxu0 0.0
    %465 = vmatprep.subr.mxu0 0.0
    %466 = vmatpush1.xpose.msra.mxu0 0.0
    %467 = vmatprep.subr.mxu0 0.0
    %468 = vmatpush1.xpose.msra.mxu0 0.0
    %469 = vmatprep.subr.mxu0 0.0
    %470 = vmatpush1.xpose.msra.mxu0 0.0
    %471 = vmatprep.subr.mxu0 0.0
    %472 = vmatpush1.xpose.msra.mxu0 0.0
    %473 = vmatprep.subr.mxu0 0.0
    %474 = vmatpush1.xpose.msra.mxu0 0.0
    %475 = vmatprep.subr.mxu0 0.0
    %476 = vmatpush1.xpose.msra.mxu0 0.0
    %477 = vmatprep.subr.mxu0 0.0
    %478 = vmatpush1.xpose.msra.mxu0 0.0
    %479 = vmatprep.subr.mxu0 0.0
    %480 = vmatpush1.xpose.msra.mxu0 0.0
    %481 = vmatprep.mubr.f32.mxu0 0.0
    %482 = vmatmul.mubr.f32.gmra.mrb[0].mxu0 %v413
    %v483 = vpop.f32.mrb[0].mxu0
    %v484 = vadd.f32 0.0, %v483
    %v485 = vpop.f32.mrb[0].mxu0
    %486 = vdwg.mxu0
    %v487 = vsel %vm247, %v484, -inf
    %488 = vmax.xlane.f32.xlu0 %v487
    %v489 = vpop.xlane.xlu0 %488
    %v490 = vsub.f32 %v484, %v489
    %v491 = vmul.f32 %v490, 1.442695
    %v492 = vpow.pop %v491
    %v493 = vsel %vm247, %v492, 0.0
    %494 = vadd.xlane.f32.xlu0 %v493
    %v495 = vpop.xlane.xlu0 %494
    %v496 = vrcp.pop %v495
    %v497 = vmul.f32 %v492, %v496
    %498 = vrot.lane.b32.xlu0 %v238, 56
    %v499 = vpop.permute.xlu0 %498
    %v502 = vsel %vm247, %v497, 0
    %504 = vmatprep.subr.mxu0 0.0
    %505 = vmatpush1.msra.mxu0 %v499
    %506 = vmatprep.subr.mxu0 0.0
    %507 = vmatpush1.msra.mxu0 0.0
    %508 = vmatprep.subr.mxu0 0.0
    %509 = vmatpush1.msra.mxu0 0.0
    %510 = vmatprep.subr.mxu0 0.0
    %511 = vmatpush1.msra.mxu0 0.0
    %512 = vmatprep.subr.mxu0 0.0
    %513 = vmatpush1.msra.mxu0 0.0
    %514 = vmatprep.subr.mxu0 0.0
    %515 = vmatpush1.msra.mxu0 0.0
    %516 = vmatprep.subr.mxu0 0.0
    %517 = vmatpush1.msra.mxu0 0.0
    %518 = vmatprep.subr.mxu0 0.0
    %519 = vmatpush1.msra.mxu0 0.0
    %520 = vmatprep.subr.mxu0 0.0
    %521 = vmatpush1.msra.mxu0 0.0
    %522 = vmatprep.subr.mxu0 0.0
    %523 = vmatpush1.msra.mxu0 0.0
    %524 = vmatprep.subr.mxu0 0.0
    %525 = vmatpush1.msra.mxu0 0.0
    %526 = vmatprep.subr.mxu0 0.0
    %527 = vmatpush1.msra.mxu0 0.0
    %528 = vmatprep.subr.mxu0 0.0
    %529 = vmatpush1.msra.mxu0 0.0
    %530 = vmatprep.subr.mxu0 0.0
    %531 = vmatpush1.msra.mxu0 0.0
    %532 = vmatprep.subr.mxu0 0.0
    %533 = vmatpush1.msra.mxu0 0.0
    %534 = vmatprep.subr.mxu0 0.0
    %535 = vmatpush1.msra.mxu0 0.0
    %536 = vmatprep.subr.mxu0 0.0
    %537 = vmatpush1.msra.mxu0 0.0
    %538 = vmatprep.subr.mxu0 0.0
    %539 = vmatpush1.msra.mxu0 0.0
    %540 = vmatprep.subr.mxu0 0.0
    %541 = vmatpush1.msra.mxu0 0.0
    %542 = vmatprep.subr.mxu0 0.0
    %543 = vmatpush1.msra.mxu0 0.0
    %544 = vmatprep.subr.mxu0 0.0
    %545 = vmatpush1.msra.mxu0 0.0
    %546 = vmatprep.subr.mxu0 0.0
    %547 = vmatpush1.msra.mxu0 0.0
    %548 = vmatprep.subr.mxu0 0.0
    %549 = vmatpush1.msra.mxu0 0.0
    %550 = vmatprep.subr.mxu0 0.0
    %551 = vmatpush1.msra.mxu0 0.0
    %552 = vmatprep.subr.mxu0 0.0
    %553 = vmatpush1.msra.mxu0 0.0
    %554 = vmatprep.subr.mxu0 0.0
    %555 = vmatpush1.msra.mxu0 0.0
    %556 = vmatprep.subr.mxu0 0.0
    %557 = vmatpush1.msra.mxu0 0.0
    %558 = vmatprep.subr.mxu0 0.0
    %559 = vmatpush1.msra.mxu0 0.0
    %560 = vmatprep.subr.mxu0 0.0
    %561 = vmatpush1.msra.mxu0 0.0
    %562 = vmatprep.subr.mxu0 0.0
    %563 = vmatpush1.msra.mxu0 0.0
    %564 = vmatprep.subr.mxu0 0.0
    %565 = vmatpush1.msra.mxu0 0.0
    %566 = vmatprep.subr.mxu0 0.0
    %567 = vmatpush1.msra.mxu0 0.0
    %568 = vmatprep.mubr.f32.mxu0 0.0
    %569 = vmatmul.mubr.f32.gmra.mrb[0].mxu0 %v502
    %v570 = vpop.f32.mrb[0].mxu0
    %v571 = vadd.f32 0.0, %v570
    %v572 = vpop.f32.mrb[0].mxu0
    %573 = vdwg.mxu0
    %574 = vrot.lane.b32.xlu0 %v238, 112
    %v575 = vpop.permute.xlu0 %574
    %576 = vrot.lane.b32.xlu0 %v238, 80
    %v577 = vpop.permute.xlu0 %576
    %v578 = vsel %vm247, %v575, 0
    %v580 = vsel %vm247, %v577, 0
    %582 = vmatprep.subr.mxu0 0.0
    %583 = vmatpush1.xpose.msra.mxu0 %v580
    %584 = vmatprep.subr.mxu0 0.0
    %585 = vmatpush1.xpose.msra.mxu0 0.0
    %586 = vmatprep.subr.mxu0 0.0
    %587 = vmatpush1.xpose.msra.mxu0 0.0
    %588 = vmatprep.subr.mxu0 0.0
    %589 = vmatpush1.xpose.msra.mxu0 0.0
    %590 = vmatprep.subr.mxu0 0.0
    %591 = vmatpush1.xpose.msra.mxu0 0.0
    %592 = vmatprep.subr.mxu0 0.0
    %593 = vmatpush1.xpose.msra.mxu0 0.0
    %594 = vmatprep.subr.mxu0 0.0
    %595 = vmatpush1.xpose.msra.mxu0 0.0
    %596 = vmatprep.subr.mxu0 0.0
    %597 = vmatpush1.xpose.msra.mxu0 0.0
    %598 = vmatprep.subr.mxu0 0.0
    %599 = vmatpush1.xpose.msra.mxu0 0.0
    %600 = vmatprep.subr.mxu0 0.0
    %601 = vmatpush1.xpose.msra.mxu0 0.0
    %602 = vmatprep.subr.mxu0 0.0
    %603 = vmatpush1.xpose.msra.mxu0 0.0
    %604 = vmatprep.subr.mxu0 0.0
    %605 = vmatpush1.xpose.msra.mxu0 0.0
    %606 = vmatprep.subr.mxu0 0.0
    %607 = vmatpush1.xpose.msra.mxu0 0.0
    %608 = vmatprep.subr.mxu0 0.0
    %609 = vmatpush1.xpose.msra.mxu0 0.0
    %610 = vmatprep.subr.mxu0 0.0
    %611 = vmatpush1.xpose.msra.mxu0 0.0
    %612 = vmatprep.subr.mxu0 0.0
    %613 = vmatpush1.xpose.msra.mxu0 0.0
    %614 = vmatprep.subr.mxu0 0.0
    %615 = vmatpush1.xpose.msra.mxu0 0.0
    %616 = vmatprep.subr.mxu0 0.0
    %617 = vmatpush1.xpose.msra.mxu0 0.0
    %618 = vmatprep.subr.mxu0 0.0
    %619 = vmatpush1.xpose.msra.mxu0 0.0
    %620 = vmatprep.subr.mxu0 0.0
    %621 = vmatpush1.xpose.msra.mxu0 0.0
    %622 = vmatprep.subr.mxu0 0.0
    %623 = vmatpush1.xpose.msra.mxu0 0.0
    %624 = vmatprep.subr.mxu0 0.0
    %625 = vmatpush1.xpose.msra.mxu0 0.0
    %626 = vmatprep.subr.mxu0 0.0
    %627 = vmatpush1.xpose.msra.mxu0 0.0
    %628 = vmatprep.subr.mxu0 0.0
    %629 = vmatpush1.xpose.msra.mxu0 0.0
    %630 = vmatprep.subr.mxu0 0.0
    %631 = vmatpush1.xpose.msra.mxu0 0.0
    %632 = vmatprep.subr.mxu0 0.0
    %633 = vmatpush1.xpose.msra.mxu0 0.0
    %634 = vmatprep.subr.mxu0 0.0
    %635 = vmatpush1.xpose.msra.mxu0 0.0
    %636 = vmatprep.subr.mxu0 0.0
    %637 = vmatpush1.xpose.msra.mxu0 0.0
    %638 = vmatprep.subr.mxu0 0.0
    %639 = vmatpush1.xpose.msra.mxu0 0.0
    %640 = vmatprep.subr.mxu0 0.0
    %641 = vmatpush1.xpose.msra.mxu0 0.0
    %642 = vmatprep.subr.mxu0 0.0
    %643 = vmatpush1.xpose.msra.mxu0 0.0
    %644 = vmatprep.subr.mxu0 0.0
    %645 = vmatpush1.xpose.msra.mxu0 0.0
    %646 = vmatprep.mubr.f32.mxu0 0.0
    %647 = vmatmul.mubr.f32.gmra.mrb[0].mxu0 %v578
    %v648 = vpop.f32.mrb[0].mxu0
    %v649 = vadd.f32 0.0, %v648
    %v650 = vpop.f32.mrb[0].mxu0
    %651 = vdwg.mxu0
    %v652 = vsel %vm247, %v649, -inf
    %653 = vmax.xlane.f32.xlu0 %v652
    %v654 = vpop.xlane.xlu0 %653
    %v655 = vsub.f32 %v649, %v654
    %v656 = vmul.f32 %v655, 1.442695
    %v657 = vpow.pop %v656
    %v658 = vsel %vm247, %v657, 0.0
    %659 = vadd.xlane.f32.xlu0 %v658
    %v660 = vpop.xlane.xlu0 %659
    %v661 = vrcp.pop %v660
    %v662 = vmul.f32 %v657, %v661
    %663 = vrot.lane.b32.xlu0 %v238, 48
    %v664 = vpop.permute.xlu0 %663
    %v667 = vsel %vm247, %v662, 0
    %669 = vmatprep.subr.mxu0 0.0
    %670 = vmatpush1.msra.mxu0 %v664
    %671 = vmatprep.subr.mxu0 0.0
    %672 = vmatpush1.msra.mxu0 0.0
    %673 = vmatprep.subr.mxu0 0.0
    %674 = vmatpush1.msra.mxu0 0.0
    %675 = vmatprep.subr.mxu0 0.0
    %676 = vmatpush1.msra.mxu0 0.0
    %677 = vmatprep.subr.mxu0 0.0
    %678 = vmatpush1.msra.mxu0 0.0
    %679 = vmatprep.subr.mxu0 0.0
    %680 = vmatpush1.msra.mxu0 0.0
    %681 = vmatprep.subr.mxu0 0.0
    %682 = vmatpush1.msra.mxu0 0.0
    %683 = vmatprep.subr.mxu0 0.0
    %684 = vmatpush1.msra.mxu0 0.0
    %685 = vmatprep.subr.mxu0 0.0
    %686 = vmatpush1.msra.mxu0 0.0
    %687 = vmatprep.subr.mxu0 0.0
    %688 = vmatpush1.msra.mxu0 0.0
    %689 = vmatprep.subr.mxu0 0.0
    %690 = vmatpush1.msra.mxu0 0.0
    %691 = vmatprep.subr.mxu0 0.0
    %692 = vmatpush1.msra.mxu0 0.0
    %693 = vmatprep.subr.mxu0 0.0
    %694 = vmatpush1.msra.mxu0 0.0
    %695 = vmatprep.subr.mxu0 0.0
    %696 = vmatpush1.msra.mxu0 0.0
    %697 = vmatprep.subr.mxu0 0.0
    %698 = vmatpush1.msra.mxu0 0.0
    %699 = vmatprep.subr.mxu0 0.0
    %700 = vmatpush1.msra.mxu0 0.0
    %701 = vmatprep.subr.mxu0 0.0
    %702 = vmatpush1.msra.mxu0 0.0
    %703 = vmatprep.subr.mxu0 0.0
    %704 = vmatpush1.msra.mxu0 0.0
    %705 = vmatprep.subr.mxu0 0.0
    %706 = vmatpush1.msra.mxu0 0.0
    %707 = vmatprep.subr.mxu0 0.0
    %708 = vmatpush1.msra.mxu0 0.0
    %709 = vmatprep.subr.mxu0 0.0
    %710 = vmatpush1.msra.mxu0 0.0
    %711 = vmatprep.subr.mxu0 0.0
    %712 = vmatpush1.msra.mxu0 0.0
    %713 = vmatprep.subr.mxu0 0.0
    %714 = vmatpush1.msra.mxu0 0.0
    %715 = vmatprep.subr.mxu0 0.0
    %716 = vmatpush1.msra.mxu0 0.0
    %717 = vmatprep.subr.mxu0 0.0
    %718 = vmatpush1.msra.mxu0 0.0
    %719 = vmatprep.subr.mxu0 0.0
    %720 = vmatpush1.msra.mxu0 0.0
    %721 = vmatprep.subr.mxu0 0.0
    %722 = vmatpush1.msra.mxu0 0.0
    %723 = vmatprep.subr.mxu0 0.0
    %724 = vmatpush1.msra.mxu0 0.0
    %725 = vmatprep.subr.mxu0 0.0
    %726 = vmatpush1.msra.mxu0 0.0
    %727 = vmatprep.subr.mxu0 0.0
    %728 = vmatpush1.msra.mxu0 0.0
    %729 = vmatprep.subr.mxu0 0.0
    %730 = vmatpush1.msra.mxu0 0.0
    %731 = vmatprep.subr.mxu0 0.0
    %732 = vmatpush1.msra.mxu0 0.0
    %733 = vmatprep.mubr.f32.mxu0 0.0
    %734 = vmatmul.mubr.f32.gmra.mrb[0].mxu0 %v667
    %v735 = vpop.f32.mrb[0].mxu0
    %v736 = vadd.f32 0.0, %v735
    %v737 = vpop.f32.mrb[0].mxu0
    %738 = vdwg.mxu0
    %739 = vrot.lane.b32.xlu0 %v238, 104
    %v740 = vpop.permute.xlu0 %739
    %741 = vrot.lane.b32.xlu0 %v238, 72
    %v742 = vpop.permute.xlu0 %741
    %v743 = vsel %vm247, %v740, 0
    %v745 = vsel %vm247, %v742, 0
    %747 = vmatprep.subr.mxu0 0.0
    %748 = vmatpush1.xpose.msra.mxu0 %v745
    %749 = vmatprep.subr.mxu0 0.0
    %750 = vmatpush1.xpose.msra.mxu0 0.0
    %751 = vmatprep.subr.mxu0 0.0
    %752 = vmatpush1.xpose.msra.mxu0 0.0
    %753 = vmatprep.subr.mxu0 0.0
    %754 = vmatpush1.xpose.msra.mxu0 0.0
    %755 = vmatprep.subr.mxu0 0.0
    %756 = vmatpush1.xpose.msra.mxu0 0.0
    %757 = vmatprep.subr.mxu0 0.0
    %758 = vmatpush1.xpose.msra.mxu0 0.0
    %759 = vmatprep.subr.mxu0 0.0
    %760 = vmatpush1.xpose.msra.mxu0 0.0
    %761 = vmatprep.subr.mxu0 0.0
    %762 = vmatpush1.xpose.msra.mxu0 0.0
    %763 = vmatprep.subr.mxu0 0.0
    %764 = vmatpush1.xpose.msra.mxu0 0.0
    %765 = vmatprep.subr.mxu0 0.0
    %766 = vmatpush1.xpose.msra.mxu0 0.0
    %767 = vmatprep.subr.mxu0 0.0
    %768 = vmatpush1.xpose.msra.mxu0 0.0
    %769 = vmatprep.subr.mxu0 0.0
    %770 = vmatpush1.xpose.msra.mxu0 0.0
    %771 = vmatprep.subr.mxu0 0.0
    %772 = vmatpush1.xpose.msra.mxu0 0.0
    %773 = vmatprep.subr.mxu0 0.0
    %774 = vmatpush1.xpose.msra.mxu0 0.0
    %775 = vmatprep.subr.mxu0 0.0
    %776 = vmatpush1.xpose.msra.mxu0 0.0
    %777 = vmatprep.subr.mxu0 0.0
    %778 = vmatpush1.xpose.msra.mxu0 0.0
    %779 = vmatprep.subr.mxu0 0.0
    %780 = vmatpush1.xpose.msra.mxu0 0.0
    %781 = vmatprep.subr.mxu0 0.0
    %782 = vmatpush1.xpose.msra.mxu0 0.0
    %783 = vmatprep.subr.mxu0 0.0
    %784 = vmatpush1.xpose.msra.mxu0 0.0
    %785 = vmatprep.subr.mxu0 0.0
    %786 = vmatpush1.xpose.msra.mxu0 0.0
    %787 = vmatprep.subr.mxu0 0.0
    %788 = vmatpush1.xpose.msra.mxu0 0.0
    %789 = vmatprep.subr.mxu0 0.0
    %790 = vmatpush1.xpose.msra.mxu0 0.0
    %791 = vmatprep.subr.mxu0 0.0
    %792 = vmatpush1.xpose.msra.mxu0 0.0
    %793 = vmatprep.subr.mxu0 0.0
    %794 = vmatpush1.xpose.msra.mxu0 0.0
    %795 = vmatprep.subr.mxu0 0.0
    %796 = vmatpush1.xpose.msra.mxu0 0.0
    %797 = vmatprep.subr.mxu0 0.0
    %798 = vmatpush1.xpose.msra.mxu0 0.0
    %799 = vmatprep.subr.mxu0 0.0
    %800 = vmatpush1.xpose.msra.mxu0 0.0
    %801 = vmatprep.subr.mxu0 0.0
    %802 = vmatpush1.xpose.msra.mxu0 0.0
    %803 = vmatprep.subr.mxu0 0.0
    %804 = vmatpush1.xpose.msra.mxu0 0.0
    %805 = vmatprep.subr.mxu0 0.0
    %806 = vmatpush1.xpose.msra.mxu0 0.0
    %807 = vmatprep.subr.mxu0 0.0
    %808 = vmatpush1.xpose.msra.mxu0 0.0
    %809 = vmatprep.subr.mxu0 0.0
    %810 = vmatpush1.xpose.msra.mxu0 0.0
    %811 = vmatprep.mubr.f32.mxu0 0.0
    %812 = vmatmul.mubr.f32.gmra.mrb[0].mxu0 %v743
    %v813 = vpop.f32.mrb[0].mxu0
    %v814 = vadd.f32 0.0, %v813
    %v815 = vpop.f32.mrb[0].mxu0
    %816 = vdwg.mxu0
    %v817 = vsel %vm247, %v814, -inf
    %818 = vmax.xlane.f32.xlu0 %v817
    %v819 = vpop.xlane.xlu0 %818
    %v820 = vsub.f32 %v814, %v819
    %v821 = vmul.f32 %v820, 1.442695
    %v822 = vpow.pop %v821
    %v823 = vsel %vm247, %v822, 0.0
    %824 = vadd.xlane.f32.xlu0 %v823
    %v825 = vpop.xlane.xlu0 %824
    %v826 = vrcp.pop %v825
    %v827 = vmul.f32 %v822, %v826
    %828 = vrot.lane.b32.xlu0 %v238, 40
    %v829 = vpop.permute.xlu0 %828
    %v832 = vsel %vm247, %v827, 0
    %834 = vmatprep.subr.mxu0 0.0
    %835 = vmatpush1.msra.mxu0 %v829
    %836 = vmatprep.subr.mxu0 0.0
    %837 = vmatpush1.msra.mxu0 0.0
    %838 = vmatprep.subr.mxu0 0.0
    %839 = vmatpush1.msra.mxu0 0.0
    %840 = vmatprep.subr.mxu0 0.0
    %841 = vmatpush1.msra.mxu0 0.0
    %842 = vmatprep.subr.mxu0 0.0
    %843 = vmatpush1.msra.mxu0 0.0
    %844 = vmatprep.subr.mxu0 0.0
    %845 = vmatpush1.msra.mxu0 0.0
    %846 = vmatprep.subr.mxu0 0.0
    %847 = vmatpush1.msra.mxu0 0.0
    %848 = vmatprep.subr.mxu0 0.0
    %849 = vmatpush1.msra.mxu0 0.0
    %850 = vmatprep.subr.mxu0 0.0
    %851 = vmatpush1.msra.mxu0 0.0
    %852 = vmatprep.subr.mxu0 0.0
    %853 = vmatpush1.msra.mxu0 0.0
    %854 = vmatprep.subr.mxu0 0.0
    %855 = vmatpush1.msra.mxu0 0.0
    %856 = vmatprep.subr.mxu0 0.0
    %857 = vmatpush1.msra.mxu0 0.0
    %858 = vmatprep.subr.mxu0 0.0
    %859 = vmatpush1.msra.mxu0 0.0
    %860 = vmatprep.subr.mxu0 0.0
    %861 = vmatpush1.msra.mxu0 0.0
    %862 = vmatprep.subr.mxu0 0.0
    %863 = vmatpush1.msra.mxu0 0.0
    %864 = vmatprep.subr.mxu0 0.0
    %865 = vmatpush1.msra.mxu0 0.0
    %866 = vmatprep.subr.mxu0 0.0
    %867 = vmatpush1.msra.mxu0 0.0
    %868 = vmatprep.subr.mxu0 0.0
    %869 = vmatpush1.msra.mxu0 0.0
    %870 = vmatprep.subr.mxu0 0.0
    %871 = vmatpush1.msra.mxu0 0.0
    %872 = vmatprep.subr.mxu0 0.0
    %873 = vmatpush1.msra.mxu0 0.0
    %874 = vmatprep.subr.mxu0 0.0
    %875 = vmatpush1.msra.mxu0 0.0
    %876 = vmatprep.subr.mxu0 0.0
    %877 = vmatpush1.msra.mxu0 0.0
    %878 = vmatprep.subr.mxu0 0.0
    %879 = vmatpush1.msra.mxu0 0.0
    %880 = vmatprep.subr.mxu0 0.0
    %881 = vmatpush1.msra.mxu0 0.0
    %882 = vmatprep.subr.mxu0 0.0
    %883 = vmatpush1.msra.mxu0 0.0
    %884 = vmatprep.subr.mxu0 0.0
    %885 = vmatpush1.msra.mxu0 0.0
    %886 = vmatprep.subr.mxu0 0.0
    %887 = vmatpush1.msra.mxu0 0.0
    %888 = vmatprep.subr.mxu0 0.0
    %889 = vmatpush1.msra.mxu0 0.0
    %890 = vmatprep.subr.mxu0 0.0
    %891 = vmatpush1.msra.mxu0 0.0
    %892 = vmatprep.subr.mxu0 0.0
    %893 = vmatpush1.msra.mxu0 0.0
    %894 = vmatprep.subr.mxu0 0.0
    %895 = vmatpush1.msra.mxu0 0.0
    %896 = vmatprep.subr.mxu0 0.0
    %897 = vmatpush1.msra.mxu0 0.0
    %898 = vmatprep.mubr.f32.mxu0 0.0
    %899 = vmatmul.mubr.f32.gmra.mrb[0].mxu0 %v832
    %v900 = vpop.f32.mrb[0].mxu0
    %v901 = vadd.f32 0.0, %v900
    %v902 = vpop.f32.mrb[0].mxu0
    %903 = vdwg.mxu0
    %905 = vrot.lane.b32.xlu0 %v571, 8
    %v906 = vpop.permute.xlu0 %905
    %909 = vrot.lane.b32.xlu0 %v736, 16
    %v910 = vpop.permute.xlu0 %909
    %913 = vrot.lane.b32.xlu0 %v901, 24
    %v914 = vpop.permute.xlu0 %913
    %v916 = vsel %vm247, %v406, %v906
    %vm917 = vcmask 130048
    %v918 = vsel %vm917, %v916, %v910
    %vm919 = vcmask 195584
    %v920 = vsel %vm919, %v918, %v914
    %922 = vrot.lane.b32.xlu0 %v241, 96
    %v923 = vpop.permute.xlu0 %922
    %v924 = vsel %vm247, %v241, 0
    %v926 = vsel %vm247, %v923, 0
    %928 = vmatprep.subr.mxu0 0.0
    %929 = vmatpush1.xpose.msra.mxu0 %v926
    %930 = vmatprep.subr.mxu0 0.0
    %931 = vmatpush1.xpose.msra.mxu0 0.0
    %932 = vmatprep.subr.mxu0 0.0
    %933 = vmatpush1.xpose.msra.mxu0 0.0
    %934 = vmatprep.subr.mxu0 0.0
    %935 = vmatpush1.xpose.msra.mxu0 0.0
    %936 = vmatprep.subr.mxu0 0.0
    %937 = vmatpush1.xpose.msra.mxu0 0.0
    %938 = vmatprep.subr.mxu0 0.0
    %939 = vmatpush1.xpose.msra.mxu0 0.0
    %940 = vmatprep.subr.mxu0 0.0
    %941 = vmatpush1.xpose.msra.mxu0 0.0
    %942 = vmatprep.subr.mxu0 0.0
    %943 = vmatpush1.xpose.msra.mxu0 0.0
    %944 = vmatprep.subr.mxu0 0.0
    %945 = vmatpush1.xpose.msra.mxu0 0.0
    %946 = vmatprep.subr.mxu0 0.0
    %947 = vmatpush1.xpose.msra.mxu0 0.0
    %948 = vmatprep.subr.mxu0 0.0
    %949 = vmatpush1.xpose.msra.mxu0 0.0
    %950 = vmatprep.subr.mxu0 0.0
    %951 = vmatpush1.xpose.msra.mxu0 0.0
    %952 = vmatprep.subr.mxu0 0.0
    %953 = vmatpush1.xpose.msra.mxu0 0.0
    %954 = vmatprep.subr.mxu0 0.0
    %955 = vmatpush1.xpose.msra.mxu0 0.0
    %956 = vmatprep.subr.mxu0 0.0
    %957 = vmatpush1.xpose.msra.mxu0 0.0
    %958 = vmatprep.subr.mxu0 0.0
    %959 = vmatpush1.xpose.msra.mxu0 0.0
    %960 = vmatprep.subr.mxu0 0.0
    %961 = vmatpush1.xpose.msra.mxu0 0.0
    %962 = vmatprep.subr.mxu0 0.0
    %963 = vmatpush1.xpose.msra.mxu0 0.0
    %964 = vmatprep.subr.mxu0 0.0
    %965 = vmatpush1.xpose.msra.mxu0 0.0
    %966 = vmatprep.subr.mxu0 0.0
    %967 = vmatpush1.xpose.msra.mxu0 0.0
    %968 = vmatprep.subr.mxu0 0.0
    %969 = vmatpush1.xpose.msra.mxu0 0.0
    %970 = vmatprep.subr.mxu0 0.0
    %971 = vmatpush1.xpose.msra.mxu0 0.0
    %972 = vmatprep.subr.mxu0 0.0
    %973 = vmatpush1.xpose.msra.mxu0 0.0
    %974 = vmatprep.subr.mxu0 0.0
    %975 = vmatpush1.xpose.msra.mxu0 0.0
    %976 = vmatprep.subr.mxu0 0.0
    %977 = vmatpush1.xpose.msra.mxu0 0.0
    %978 = vmatprep.subr.mxu0 0.0
    %979 = vmatpush1.xpose.msra.mxu0 0.0
    %980 = vmatprep.subr.mxu0 0.0
    %981 = vmatpush1.xpose.msra.mxu0 0.0
    %982 = vmatprep.subr.mxu0 0.0
    %983 = vmatpush1.xpose.msra.mxu0 0.0
    %984 = vmatprep.subr.mxu0 0.0
    %985 = vmatpush1.xpose.msra.mxu0 0.0
    %986 = vmatprep.subr.mxu0 0.0
    %987 = vmatpush1.xpose.msra.mxu0 0.0
    %988 = vmatprep.subr.mxu0 0.0
    %989 = vmatpush1.xpose.msra.mxu0 0.0
    %990 = vmatprep.subr.mxu0 0.0
    %991 = vmatpush1.xpose.msra.mxu0 0.0
    %992 = vmatprep.mubr.f32.mxu0 0.0
    %993 = vmatmul.mubr.f32.gmra.mrb[0].mxu0 %v924
    %v994 = vpop.f32.mrb[0].mxu0
    %v995 = vadd.f32 0.0, %v994
    %v996 = vpop.f32.mrb[0].mxu0
    %997 = vdwg.mxu0
    %v998 = vsel %vm247, %v995, -inf
    %999 = vmax.xlane.f32.xlu0 %v998
    %v1000 = vpop.xlane.xlu0 %999
    %v1001 = vsub.f32 %v995, %v1000
    %v1002 = vmul.f32 %v1001, 1.442695
    %v1003 = vpow.pop %v1002
    %v1004 = vsel %vm247, %v1003, 0.0
    %1005 = vadd.xlane.f32.xlu0 %v1004
    %v1006 = vpop.xlane.xlu0 %1005
    %v1007 = vrcp.pop %v1006
    %v1008 = vmul.f32 %v1003, %v1007
    %1009 = vrot.lane.b32.xlu0 %v241, 64
    %v1010 = vpop.permute.xlu0 %1009
    %v1013 = vsel %vm247, %v1008, 0
    %1015 = vmatprep.subr.mxu0 0.0
    %1016 = vmatpush1.msra.mxu0 %v1010
    %1017 = vmatprep.subr.mxu0 0.0
    %1018 = vmatpush1.msra.mxu0 0.0
    %1019 = vmatprep.subr.mxu0 0.0
    %1020 = vmatpush1.msra.mxu0 0.0
    %1021 = vmatprep.subr.mxu0 0.0
    %1022 = vmatpush1.msra.mxu0 0.0
    %1023 = vmatprep.subr.mxu0 0.0
    %1024 = vmatpush1.msra.mxu0 0.0
    %1025 = vmatprep.subr.mxu0 0.0
    %1026 = vmatpush1.msra.mxu0 0.0
    %1027 = vmatprep.subr.mxu0 0.0
    %1028 = vmatpush1.msra.mxu0 0.0
    %1029 = vmatprep.subr.mxu0 0.0
    %1030 = vmatpush1.msra.mxu0 0.0
    %1031 = vmatprep.subr.mxu0 0.0
    %1032 = vmatpush1.msra.mxu0 0.0
    %1033 = vmatprep.subr.mxu0 0.0
    %1034 = vmatpush1.msra.mxu0 0.0
    %1035 = vmatprep.subr.mxu0 0.0
    %1036 = vmatpush1.msra.mxu0 0.0
    %1037 = vmatprep.subr.mxu0 0.0
    %1038 = vmatpush1.msra.mxu0 0.0
    %1039 = vmatprep.subr.mxu0 0.0
    %1040 = vmatpush1.msra.mxu0 0.0
    %1041 = vmatprep.subr.mxu0 0.0
    %1042 = vmatpush1.msra.mxu0 0.0
    %1043 = vmatprep.subr.mxu0 0.0
    %1044 = vmatpush1.msra.mxu0 0.0
    %1045 = vmatprep.subr.mxu0 0.0
    %1046 = vmatpush1.msra.mxu0 0.0
    %1047 = vmatprep.subr.mxu0 0.0
    %1048 = vmatpush1.msra.mxu0 0.0
    %1049 = vmatprep.subr.mxu0 0.0
    %1050 = vmatpush1.msra.mxu0 0.0
    %1051 = vmatprep.subr.mxu0 0.0
    %1052 = vmatpush1.msra.mxu0 0.0
    %1053 = vmatprep.subr.mxu0 0.0
    %1054 = vmatpush1.msra.mxu0 0.0
    %1055 = vmatprep.subr.mxu0 0.0
    %1056 = vmatpush1.msra.mxu0 0.0
    %1057 = vmatprep.subr.mxu0 0.0
    %1058 = vmatpush1.msra.mxu0 0.0
    %1059 = vmatprep.subr.mxu0 0.0
    %1060 = vmatpush1.msra.mxu0 0.0
    %1061 = vmatprep.subr.mxu0 0.0
    %1062 = vmatpush1.msra.mxu0 0.0
    %1063 = vmatprep.subr.mxu0 0.0
    %1064 = vmatpush1.msra.mxu0 0.0
    %1065 = vmatprep.subr.mxu0 0.0
    %1066 = vmatpush1.msra.mxu0 0.0
    %1067 = vmatprep.subr.mxu0 0.0
    %1068 = vmatpush1.msra.mxu0 0.0
    %1069 = vmatprep.subr.mxu0 0.0
    %1070 = vmatpush1.msra.mxu0 0.0
    %1071 = vmatprep.subr.mxu0 0.0
    %1072 = vmatpush1.msra.mxu0 0.0
    %1073 = vmatprep.subr.mxu0 0.0
    %1074 = vmatpush1.msra.mxu0 0.0
    %1075 = vmatprep.subr.mxu0 0.0
    %1076 = vmatpush1.msra.mxu0 0.0
    %1077 = vmatprep.subr.mxu0 0.0
    %1078 = vmatpush1.msra.mxu0 0.0
    %1079 = vmatprep.mubr.f32.mxu0 0.0
    %1080 = vmatmul.mubr.f32.gmra.mrb[0].mxu0 %v1013
    %v1081 = vpop.f32.mrb[0].mxu0
    %v1082 = vadd.f32 0.0, %v1081
    %v1083 = vpop.f32.mrb[0].mxu0
    %1084 = vdwg.mxu0
    %1085 = vrot.lane.b32.xlu0 %v241, 120
    %v1086 = vpop.permute.xlu0 %1085
    %1087 = vrot.lane.b32.xlu0 %v241, 88
    %v1088 = vpop.permute.xlu0 %1087
    %v1089 = vsel %vm247, %v1086, 0
    %v1091 = vsel %vm247, %v1088, 0
    %1093 = vmatprep.subr.mxu0 0.0
    %1094 = vmatpush1.xpose.msra.mxu0 %v1091
    %1095 = vmatprep.subr.mxu0 0.0
    %1096 = vmatpush1.xpose.msra.mxu0 0.0
    %1097 = vmatprep.subr.mxu0 0.0
    %1098 = vmatpush1.xpose.msra.mxu0 0.0
    %1099 = vmatprep.subr.mxu0 0.0
    %1100 = vmatpush1.xpose.msra.mxu0 0.0
    %1101 = vmatprep.subr.mxu0 0.0
    %1102 = vmatpush1.xpose.msra.mxu0 0.0
    %1103 = vmatprep.subr.mxu0 0.0
    %1104 = vmatpush1.xpose.msra.mxu0 0.0
    %1105 = vmatprep.subr.mxu0 0.0
    %1106 = vmatpush1.xpose.msra.mxu0 0.0
    %1107 = vmatprep.subr.mxu0 0.0
    %1108 = vmatpush1.xpose.msra.mxu0 0.0
    %1109 = vmatprep.subr.mxu0 0.0
    %1110 = vmatpush1.xpose.msra.mxu0 0.0
    %1111 = vmatprep.subr.mxu0 0.0
    %1112 = vmatpush1.xpose.msra.mxu0 0.0
    %1113 = vmatprep.subr.mxu0 0.0
    %1114 = vmatpush1.xpose.msra.mxu0 0.0
    %1115 = vmatprep.subr.mxu0 0.0
    %1116 = vmatpush1.xpose.msra.mxu0 0.0
    %1117 = vmatprep.subr.mxu0 0.0
    %1118 = vmatpush1.xpose.msra.mxu0 0.0
    %1119 = vmatprep.subr.mxu0 0.0
    %1120 = vmatpush1.xpose.msra.mxu0 0.0
    %1121 = vmatprep.subr.mxu0 0.0
    %1122 = vmatpush1.xpose.msra.mxu0 0.0
    %1123 = vmatprep.subr.mxu0 0.0
    %1124 = vmatpush1.xpose.msra.mxu0 0.0
    %1125 = vmatprep.subr.mxu0 0.0
    %1126 = vmatpush1.xpose.msra.mxu0 0.0
    %1127 = vmatprep.subr.mxu0 0.0
    %1128 = vmatpush1.xpose.msra.mxu0 0.0
    %1129 = vmatprep.subr.mxu0 0.0
    %1130 = vmatpush1.xpose.msra.mxu0 0.0
    %1131 = vmatprep.subr.mxu0 0.0
    %1132 = vmatpush1.xpose.msra.mxu0 0.0
    %1133 = vmatprep.subr.mxu0 0.0
    %1134 = vmatpush1.xpose.msra.mxu0 0.0
    %1135 = vmatprep.subr.mxu0 0.0
    %1136 = vmatpush1.xpose.msra.mxu0 0.0
    %1137 = vmatprep.subr.mxu0 0.0
    %1138 = vmatpush1.xpose.msra.mxu0 0.0
    %1139 = vmatprep.subr.mxu0 0.0
    %1140 = vmatpush1.xpose.msra.mxu0 0.0
    %1141 = vmatprep.subr.mxu0 0.0
    %1142 = vmatpush1.xpose.msra.mxu0 0.0
    %1143 = vmatprep.subr.mxu0 0.0
    %1144 = vmatpush1.xpose.msra.mxu0 0.0
    %1145 = vmatprep.subr.mxu0 0.0
    %1146 = vmatpush1.xpose.msra.mxu0 0.0
    %1147 = vmatprep.subr.mxu0 0.0
    %1148 = vmatpush1.xpose.msra.mxu0 0.0
    %1149 = vmatprep.subr.mxu0 0.0
    %1150 = vmatpush1.xpose.msra.mxu0 0.0
    %1151 = vmatprep.subr.mxu0 0.0
    %1152 = vmatpush1.xpose.msra.mxu0 0.0
    %1153 = vmatprep.subr.mxu0 0.0
    %1154 = vmatpush1.xpose.msra.mxu0 0.0
    %1155 = vmatprep.subr.mxu0 0.0
    %1156 = vmatpush1.xpose.msra.mxu0 0.0
    %1157 = vmatprep.mubr.f32.mxu0 0.0
    %1158 = vmatmul.mubr.f32.gmra.mrb[0].mxu0 %v1089
    %v1159 = vpop.f32.mrb[0].mxu0
    %v1160 = vadd.f32 0.0, %v1159
    %v1161 = vpop.f32.mrb[0].mxu0
    %1162 = vdwg.mxu0
    %v1163 = vsel %vm247, %v1160, -inf
    %1164 = vmax.xlane.f32.xlu0 %v1163
    %v1165 = vpop.xlane.xlu0 %1164
    %v1166 = vsub.f32 %v1160, %v1165
    %v1167 = vmul.f32 %v1166, 1.442695
    %v1168 = vpow.pop %v1167
    %v1169 = vsel %vm247, %v1168, 0.0
    %1170 = vadd.xlane.f32.xlu0 %v1169
    %v1171 = vpop.xlane.xlu0 %1170
    %v1172 = vrcp.pop %v1171
    %v1173 = vmul.f32 %v1168, %v1172
    %1174 = vrot.lane.b32.xlu0 %v241, 56
    %v1175 = vpop.permute.xlu0 %1174
    %v1178 = vsel %vm247, %v1173, 0
    %1180 = vmatprep.subr.mxu0 0.0
    %1181 = vmatpush1.msra.mxu0 %v1175
    %1182 = vmatprep.subr.mxu0 0.0
    %1183 = vmatpush1.msra.mxu0 0.0
    %1184 = vmatprep.subr.mxu0 0.0
    %1185 = vmatpush1.msra.mxu0 0.0
    %1186 = vmatprep.subr.mxu0 0.0
    %1187 = vmatpush1.msra.mxu0 0.0
    %1188 = vmatprep.subr.mxu0 0.0
    %1189 = vmatpush1.msra.mxu0 0.0
    %1190 = vmatprep.subr.mxu0 0.0
    %1191 = vmatpush1.msra.mxu0 0.0
    %1192 = vmatprep.subr.mxu0 0.0
    %1193 = vmatpush1.msra.mxu0 0.0
    %1194 = vmatprep.subr.mxu0 0.0
    %1195 = vmatpush1.msra.mxu0 0.0
    %1196 = vmatprep.subr.mxu0 0.0
    %1197 = vmatpush1.msra.mxu0 0.0
    %1198 = vmatprep.subr.mxu0 0.0
    %1199 = vmatpush1.msra.mxu0 0.0
    %1200 = vmatprep.subr.mxu0 0.0
    %1201 = vmatpush1.msra.mxu0 0.0
    %1202 = vmatprep.subr.mxu0 0.0
    %1203 = vmatpush1.msra.mxu0 0.0
    %1204 = vmatprep.subr.mxu0 0.0
    %1205 = vmatpush1.msra.mxu0 0.0
    %1206 = vmatprep.subr.mxu0 0.0
    %1207 = vmatpush1.msra.mxu0 0.0
    %1208 = vmatprep.subr.mxu0 0.0
    %1209 = vmatpush1.msra.mxu0 0.0
    %1210 = vmatprep.subr.mxu0 0.0
    %1211 = vmatpush1.msra.mxu0 0.0
    %1212 = vmatprep.subr.mxu0 0.0
    %1213 = vmatpush1.msra.mxu0 0.0
    %1214 = vmatprep.subr.mxu0 0.0
    %1215 = vmatpush1.msra.mxu0 0.0
    %1216 = vmatprep.subr.mxu0 0.0
    %1217 = vmatpush1.msra.mxu0 0.0
    %1218 = vmatprep.subr.mxu0 0.0
    %1219 = vmatpush1.msra.mxu0 0.0
    %1220 = vmatprep.subr.mxu0 0.0
    %1221 = vmatpush1.msra.mxu0 0.0
    %1222 = vmatprep.subr.mxu0 0.0
    %1223 = vmatpush1.msra.mxu0 0.0
    %1224 = vmatprep.subr.mxu0 0.0
    %1225 = vmatpush1.msra.mxu0 0.0
    %1226 = vmatprep.subr.mxu0 0.0
    %1227 = vmatpush1.msra.mxu0 0.0
    %1228 = vmatprep.subr.mxu0 0.0
    %1229 = vmatpush1.msra.mxu0 0.0
    %1230 = vmatprep.subr.mxu0 0.0
    %1231 = vmatpush1.msra.mxu0 0.0
    %1232 = vmatprep.subr.mxu0 0.0
    %1233 = vmatpush1.msra.mxu0 0.0
    %1234 = vmatprep.subr.mxu0 0.0
    %1235 = vmatpush1.msra.mxu0 0.0
    %1236 = vmatprep.subr.mxu0 0.0
    %1237 = vmatpush1.msra.mxu0 0.0
    %1238 = vmatprep.subr.mxu0 0.0
    %1239 = vmatpush1.msra.mxu0 0.0
    %1240 = vmatprep.subr.mxu0 0.0
    %1241 = vmatpush1.msra.mxu0 0.0
    %1242 = vmatprep.subr.mxu0 0.0
    %1243 = vmatpush1.msra.mxu0 0.0
    %1244 = vmatprep.mubr.f32.mxu0 0.0
    %1245 = vmatmul.mubr.f32.gmra.mrb[0].mxu0 %v1178
    %v1246 = vpop.f32.mrb[0].mxu0
    %v1247 = vadd.f32 0.0, %v1246
    %v1248 = vpop.f32.mrb[0].mxu0
    %1249 = vdwg.mxu0
    %1250 = vrot.lane.b32.xlu0 %v241, 112
    %v1251 = vpop.permute.xlu0 %1250
    %1252 = vrot.lane.b32.xlu0 %v241, 80
    %v1253 = vpop.permute.xlu0 %1252
    %v1254 = vsel %vm247, %v1251, 0
    %v1256 = vsel %vm247, %v1253, 0
    %1258 = vmatprep.subr.mxu0 0.0
    %1259 = vmatpush1.xpose.msra.mxu0 %v1256
    %1260 = vmatprep.subr.mxu0 0.0
    %1261 = vmatpush1.xpose.msra.mxu0 0.0
    %1262 = vmatprep.subr.mxu0 0.0
    %1263 = vmatpush1.xpose.msra.mxu0 0.0
    %1264 = vmatprep.subr.mxu0 0.0
    %1265 = vmatpush1.xpose.msra.mxu0 0.0
    %1266 = vmatprep.subr.mxu0 0.0
    %1267 = vmatpush1.xpose.msra.mxu0 0.0
    %1268 = vmatprep.subr.mxu0 0.0
    %1269 = vmatpush1.xpose.msra.mxu0 0.0
    %1270 = vmatprep.subr.mxu0 0.0
    %1271 = vmatpush1.xpose.msra.mxu0 0.0
    %1272 = vmatprep.subr.mxu0 0.0
    %1273 = vmatpush1.xpose.msra.mxu0 0.0
    %1274 = vmatprep.subr.mxu0 0.0
    %1275 = vmatpush1.xpose.msra.mxu0 0.0
    %1276 = vmatprep.subr.mxu0 0.0
    %1277 = vmatpush1.xpose.msra.mxu0 0.0
    %1278 = vmatprep.subr.mxu0 0.0
    %1279 = vmatpush1.xpose.msra.mxu0 0.0
    %1280 = vmatprep.subr.mxu0 0.0
    %1281 = vmatpush1.xpose.msra.mxu0 0.0
    %1282 = vmatprep.subr.mxu0 0.0
    %1283 = vmatpush1.xpose.msra.mxu0 0.0
    %1284 = vmatprep.subr.mxu0 0.0
    %1285 = vmatpush1.xpose.msra.mxu0 0.0
    %1286 = vmatprep.subr.mxu0 0.0
    %1287 = vmatpush1.xpose.msra.mxu0 0.0
    %1288 = vmatprep.subr.mxu0 0.0
    %1289 = vmatpush1.xpose.msra.mxu0 0.0
    %1290 = vmatprep.subr.mxu0 0.0
    %1291 = vmatpush1.xpose.msra.mxu0 0.0
    %1292 = vmatprep.subr.mxu0 0.0
    %1293 = vmatpush1.xpose.msra.mxu0 0.0
    %1294 = vmatprep.subr.mxu0 0.0
    %1295 = vmatpush1.xpose.msra.mxu0 0.0
    %1296 = vmatprep.subr.mxu0 0.0
    %1297 = vmatpush1.xpose.msra.mxu0 0.0
    %1298 = vmatprep.subr.mxu0 0.0
    %1299 = vmatpush1.xpose.msra.mxu0 0.0
    %1300 = vmatprep.subr.mxu0 0.0
    %1301 = vmatpush1.xpose.msra.mxu0 0.0
    %1302 = vmatprep.subr.mxu0 0.0
    %1303 = vmatpush1.xpose.msra.mxu0 0.0
    %1304 = vmatprep.subr.mxu0 0.0
    %1305 = vmatpush1.xpose.msra.mxu0 0.0
    %1306 = vmatprep.subr.mxu0 0.0
    %1307 = vmatpush1.xpose.msra.mxu0 0.0
    %1308 = vmatprep.subr.mxu0 0.0
    %1309 = vmatpush1.xpose.msra.mxu0 0.0
    %1310 = vmatprep.subr.mxu0 0.0
    %1311 = vmatpush1.xpose.msra.mxu0 0.0
    %1312 = vmatprep.subr.mxu0 0.0
    %1313 = vmatpush1.xpose.msra.mxu0 0.0
    %1314 = vmatprep.subr.mxu0 0.0
    %1315 = vmatpush1.xpose.msra.mxu0 0.0
    %1316 = vmatprep.subr.mxu0 0.0
    %1317 = vmatpush1.xpose.msra.mxu0 0.0
    %1318 = vmatprep.subr.mxu0 0.0
    %1319 = vmatpush1.xpose.msra.mxu0 0.0
    %1320 = vmatprep.subr.mxu0 0.0
    %1321 = vmatpush1.xpose.msra.mxu0 0.0
    %1322 = vmatprep.mubr.f32.mxu0 0.0
    %1323 = vmatmul.mubr.f32.gmra.mrb[0].mxu0 %v1254
    %v1324 = vpop.f32.mrb[0].mxu0
    %v1325 = vadd.f32 0.0, %v1324
    %v1326 = vpop.f32.mrb[0].mxu0
    %1327 = vdwg.mxu0
    %v1328 = vsel %vm247, %v1325, -inf
    %1329 = vmax.xlane.f32.xlu0 %v1328
    %v1330 = vpop.xlane.xlu0 %1329
    %v1331 = vsub.f32 %v1325, %v1330
    %v1332 = vmul.f32 %v1331, 1.442695
    %v1333 = vpow.pop %v1332
    %v1334 = vsel %vm247, %v1333, 0.0
    %1335 = vadd.xlane.f32.xlu0 %v1334
    %v1336 = vpop.xlane.xlu0 %1335
    %v1337 = vrcp.pop %v1336
    %v1338 = vmul.f32 %v1333, %v1337
    %1339 = vrot.lane.b32.xlu0 %v241, 48
    %v1340 = vpop.permute.xlu0 %1339
    %v1343 = vsel %vm247, %v1338, 0
    %1345 = vmatprep.subr.mxu0 0.0
    %1346 = vmatpush1.msra.mxu0 %v1340
    %1347 = vmatprep.subr.mxu0 0.0
    %1348 = vmatpush1.msra.mxu0 0.0
    %1349 = vmatprep.subr.mxu0 0.0
    %1350 = vmatpush1.msra.mxu0 0.0
    %1351 = vmatprep.subr.mxu0 0.0
    %1352 = vmatpush1.msra.mxu0 0.0
    %1353 = vmatprep.subr.mxu0 0.0
    %1354 = vmatpush1.msra.mxu0 0.0
    %1355 = vmatprep.subr.mxu0 0.0
    %1356 = vmatpush1.msra.mxu0 0.0
    %1357 = vmatprep.subr.mxu0 0.0
    %1358 = vmatpush1.msra.mxu0 0.0
    %1359 = vmatprep.subr.mxu0 0.0
    %1360 = vmatpush1.msra.mxu0 0.0
    %1361 = vmatprep.subr.mxu0 0.0
    %1362 = vmatpush1.msra.mxu0 0.0
    %1363 = vmatprep.subr.mxu0 0.0
    %1364 = vmatpush1.msra.mxu0 0.0
    %1365 = vmatprep.subr.mxu0 0.0
    %1366 = vmatpush1.msra.mxu0 0.0
    %1367 = vmatprep.subr.mxu0 0.0
    %1368 = vmatpush1.msra.mxu0 0.0
    %1369 = vmatprep.subr.mxu0 0.0
    %1370 = vmatpush1.msra.mxu0 0.0
    %1371 = vmatprep.subr.mxu0 0.0
    %1372 = vmatpush1.msra.mxu0 0.0
    %1373 = vmatprep.subr.mxu0 0.0
    %1374 = vmatpush1.msra.mxu0 0.0
    %1375 = vmatprep.subr.mxu0 0.0
    %1376 = vmatpush1.msra.mxu0 0.0
    %1377 = vmatprep.subr.mxu0 0.0
    %1378 = vmatpush1.msra.mxu0 0.0
    %1379 = vmatprep.subr.mxu0 0.0
    %1380 = vmatpush1.msra.mxu0 0.0
    %1381 = vmatprep.subr.mxu0 0.0
    %1382 = vmatpush1.msra.mxu0 0.0
    %1383 = vmatprep.subr.mxu0 0.0
    %1384 = vmatpush1.msra.mxu0 0.0
    %1385 = vmatprep.subr.mxu0 0.0
    %1386 = vmatpush1.msra.mxu0 0.0
    %1387 = vmatprep.subr.mxu0 0.0
    %1388 = vmatpush1.msra.mxu0 0.0
    %1389 = vmatprep.subr.mxu0 0.0
    %1390 = vmatpush1.msra.mxu0 0.0
    %1391 = vmatprep.subr.mxu0 0.0
    %1392 = vmatpush1.msra.mxu0 0.0
    %1393 = vmatprep.subr.mxu0 0.0
    %1394 = vmatpush1.msra.mxu0 0.0
    %1395 = vmatprep.subr.mxu0 0.0
    %1396 = vmatpush1.msra.mxu0 0.0
    %1397 = vmatprep.subr.mxu0 0.0
    %1398 = vmatpush1.msra.mxu0 0.0
    %1399 = vmatprep.subr.mxu0 0.0
    %1400 = vmatpush1.msra.mxu0 0.0
    %1401 = vmatprep.subr.mxu0 0.0
    %1402 = vmatpush1.msra.mxu0 0.0
    %1403 = vmatprep.subr.mxu0 0.0
    %1404 = vmatpush1.msra.mxu0 0.0
    %1405 = vmatprep.subr.mxu0 0.0
    %1406 = vmatpush1.msra.mxu0 0.0
    %1407 = vmatprep.subr.mxu0 0.0
    %1408 = vmatpush1.msra.mxu0 0.0
    %1409 = vmatprep.mubr.f32.mxu0 0.0
    %1410 = vmatmul.mubr.f32.gmra.mrb[0].mxu0 %v1343
    %v1411 = vpop.f32.mrb[0].mxu0
    %v1412 = vadd.f32 0.0, %v1411
    %v1413 = vpop.f32.mrb[0].mxu0
    %1414 = vdwg.mxu0
    %1415 = vrot.lane.b32.xlu0 %v241, 104
    %v1416 = vpop.permute.xlu0 %1415
    %1417 = vrot.lane.b32.xlu0 %v241, 72
    %v1418 = vpop.permute.xlu0 %1417
    %v1419 = vsel %vm247, %v1416, 0
    %v1421 = vsel %vm247, %v1418, 0
    %1423 = vmatprep.subr.mxu0 0.0
    %1424 = vmatpush1.xpose.msra.mxu0 %v1421
    %1425 = vmatprep.subr.mxu0 0.0
    %1426 = vmatpush1.xpose.msra.mxu0 0.0
    %1427 = vmatprep.subr.mxu0 0.0
    %1428 = vmatpush1.xpose.msra.mxu0 0.0
    %1429 = vmatprep.subr.mxu0 0.0
    %1430 = vmatpush1.xpose.msra.mxu0 0.0
    %1431 = vmatprep.subr.mxu0 0.0
    %1432 = vmatpush1.xpose.msra.mxu0 0.0
    %1433 = vmatprep.subr.mxu0 0.0
    %1434 = vmatpush1.xpose.msra.mxu0 0.0
    %1435 = vmatprep.subr.mxu0 0.0
    %1436 = vmatpush1.xpose.msra.mxu0 0.0
    %1437 = vmatprep.subr.mxu0 0.0
    %1438 = vmatpush1.xpose.msra.mxu0 0.0
    %1439 = vmatprep.subr.mxu0 0.0
    %1440 = vmatpush1.xpose.msra.mxu0 0.0
    %1441 = vmatprep.subr.mxu0 0.0
    %1442 = vmatpush1.xpose.msra.mxu0 0.0
    %1443 = vmatprep.subr.mxu0 0.0
    %1444 = vmatpush1.xpose.msra.mxu0 0.0
    %1445 = vmatprep.subr.mxu0 0.0
    %1446 = vmatpush1.xpose.msra.mxu0 0.0
    %1447 = vmatprep.subr.mxu0 0.0
    %1448 = vmatpush1.xpose.msra.mxu0 0.0
    %1449 = vmatprep.subr.mxu0 0.0
    %1450 = vmatpush1.xpose.msra.mxu0 0.0
    %1451 = vmatprep.subr.mxu0 0.0
    %1452 = vmatpush1.xpose.msra.mxu0 0.0
    %1453 = vmatprep.subr.mxu0 0.0
    %1454 = vmatpush1.xpose.msra.mxu0 0.0
    %1455 = vmatprep.subr.mxu0 0.0
    %1456 = vmatpush1.xpose.msra.mxu0 0.0
    %1457 = vmatprep.subr.mxu0 0.0
    %1458 = vmatpush1.xpose.msra.mxu0 0.0
    %1459 = vmatprep.subr.mxu0 0.0
    %1460 = vmatpush1.xpose.msra.mxu0 0.0
    %1461 = vmatprep.subr.mxu0 0.0
    %1462 = vmatpush1.xpose.msra.mxu0 0.0
    %1463 = vmatprep.subr.mxu0 0.0
    %1464 = vmatpush1.xpose.msra.mxu0 0.0
    %1465 = vmatprep.subr.mxu0 0.0
    %1466 = vmatpush1.xpose.msra.mxu0 0.0
    %1467 = vmatprep.subr.mxu0 0.0
    %1468 = vmatpush1.xpose.msra.mxu0 0.0
    %1469 = vmatprep.subr.mxu0 0.0
    %1470 = vmatpush1.xpose.msra.mxu0 0.0
    %1471 = vmatprep.subr.mxu0 0.0
    %1472 = vmatpush1.xpose.msra.mxu0 0.0
    %1473 = vmatprep.subr.mxu0 0.0
    %1474 = vmatpush1.xpose.msra.mxu0 0.0
    %1475 = vmatprep.subr.mxu0 0.0
    %1476 = vmatpush1.xpose.msra.mxu0 0.0
    %1477 = vmatprep.subr.mxu0 0.0
    %1478 = vmatpush1.xpose.msra.mxu0 0.0
    %1479 = vmatprep.subr.mxu0 0.0
    %1480 = vmatpush1.xpose.msra.mxu0 0.0
    %1481 = vmatprep.subr.mxu0 0.0
    %1482 = vmatpush1.xpose.msra.mxu0 0.0
    %1483 = vmatprep.subr.mxu0 0.0
    %1484 = vmatpush1.xpose.msra.mxu0 0.0
    %1485 = vmatprep.subr.mxu0 0.0
    %1486 = vmatpush1.xpose.msra.mxu0 0.0
    %1487 = vmatprep.mubr.f32.mxu0 0.0
    %1488 = vmatmul.mubr.f32.gmra.mrb[0].mxu0 %v1419
    %v1489 = vpop.f32.mrb[0].mxu0
    %v1490 = vadd.f32 0.0, %v1489
    %v1491 = vpop.f32.mrb[0].mxu0
    %1492 = vdwg.mxu0
    %v1493 = vsel %vm247, %v1490, -inf
    %1494 = vmax.xlane.f32.xlu0 %v1493
    %v1495 = vpop.xlane.xlu0 %1494
    %v1496 = vsub.f32 %v1490, %v1495
    %v1497 = vmul.f32 %v1496, 1.442695
    %v1498 = vpow.pop %v1497
    %v1499 = vsel %vm247, %v1498, 0.0
    %1500 = vadd.xlane.f32.xlu0 %v1499
    %v1501 = vpop.xlane.xlu0 %1500
    %v1502 = vrcp.pop %v1501
    %v1503 = vmul.f32 %v1498, %v1502
    %1504 = vrot.lane.b32.xlu0 %v241, 40
    %v1505 = vpop.permute.xlu0 %1504
    %v1508 = vsel %vm247, %v1503, 0
    %1510 = vmatprep.subr.mxu0 0.0
    %1511 = vmatpush1.msra.mxu0 %v1505
    %1512 = vmatprep.subr.mxu0 0.0
    %1513 = vmatpush1.msra.mxu0 0.0
    %1514 = vmatprep.subr.mxu0 0.0
    %1515 = vmatpush1.msra.mxu0 0.0
    %1516 = vmatprep.subr.mxu0 0.0
    %1517 = vmatpush1.msra.mxu0 0.0
    %1518 = vmatprep.subr.mxu0 0.0
    %1519 = vmatpush1.msra.mxu0 0.0
    %1520 = vmatprep.subr.mxu0 0.0
    %1521 = vmatpush1.msra.mxu0 0.0
    %1522 = vmatprep.subr.mxu0 0.0
    %1523 = vmatpush1.msra.mxu0 0.0
    %1524 = vmatprep.subr.mxu0 0.0
    %1525 = vmatpush1.msra.mxu0 0.0
    %1526 = vmatprep.subr.mxu0 0.0
    %1527 = vmatpush1.msra.mxu0 0.0
    %1528 = vmatprep.subr.mxu0 0.0
    %1529 = vmatpush1.msra.mxu0 0.0
    %1530 = vmatprep.subr.mxu0 0.0
    %1531 = vmatpush1.msra.mxu0 0.0
    %1532 = vmatprep.subr.mxu0 0.0
    %1533 = vmatpush1.msra.mxu0 0.0
    %1534 = vmatprep.subr.mxu0 0.0
    %1535 = vmatpush1.msra.mxu0 0.0
    %1536 = vmatprep.subr.mxu0 0.0
    %1537 = vmatpush1.msra.mxu0 0.0
    %1538 = vmatprep.subr.mxu0 0.0
    %1539 = vmatpush1.msra.mxu0 0.0
    %1540 = vmatprep.subr.mxu0 0.0
    %1541 = vmatpush1.msra.mxu0 0.0
    %1542 = vmatprep.subr.mxu0 0.0
    %1543 = vmatpush1.msra.mxu0 0.0
    %1544 = vmatprep.subr.mxu0 0.0
    %1545 = vmatpush1.msra.mxu0 0.0
    %1546 = vmatprep.subr.mxu0 0.0
    %1547 = vmatpush1.msra.mxu0 0.0
    %1548 = vmatprep.subr.mxu0 0.0
    %1549 = vmatpush1.msra.mxu0 0.0
    %1550 = vmatprep.subr.mxu0 0.0
    %1551 = vmatpush1.msra.mxu0 0.0
    %1552 = vmatprep.subr.mxu0 0.0
    %1553 = vmatpush1.msra.mxu0 0.0
    %1554 = vmatprep.subr.mxu0 0.0
    %1555 = vmatpush1.msra.mxu0 0.0
    %1556 = vmatprep.subr.mxu0 0.0
    %1557 = vmatpush1.msra.mxu0 0.0
    %1558 = vmatprep.subr.mxu0 0.0
    %1559 = vmatpush1.msra.mxu0 0.0
    %1560 = vmatprep.subr.mxu0 0.0
    %1561 = vmatpush1.msra.mxu0 0.0
    %1562 = vmatprep.subr.mxu0 0.0
    %1563 = vmatpush1.msra.mxu0 0.0
    %1564 = vmatprep.subr.mxu0 0.0
    %1565 = vmatpush1.msra.mxu0 0.0
    %1566 = vmatprep.subr.mxu0 0.0
    %1567 = vmatpush1.msra.mxu0 0.0
    %1568 = vmatprep.subr.mxu0 0.0
    %1569 = vmatpush1.msra.mxu0 0.0
    %1570 = vmatprep.subr.mxu0 0.0
    %1571 = vmatpush1.msra.mxu0 0.0
    %1572 = vmatprep.subr.mxu0 0.0
    %1573 = vmatpush1.msra.mxu0 0.0
    %1574 = vmatprep.mubr.f32.mxu0 0.0
    %1575 = vmatmul.mubr.f32.gmra.mrb[0].mxu0 %v1508
    %v1576 = vpop.f32.mrb[0].mxu0
    %v1577 = vadd.f32 0.0, %v1576
    %v1578 = vpop.f32.mrb[0].mxu0
    %1579 = vdwg.mxu0
    %1581 = vrot.lane.b32.xlu0 %v1247, 8
    %v1582 = vpop.permute.xlu0 %1581
    %1585 = vrot.lane.b32.xlu0 %v1412, 16
    %v1586 = vpop.permute.xlu0 %1585
    %1589 = vrot.lane.b32.xlu0 %v1577, 24
    %v1590 = vpop.permute.xlu0 %1589
    %v1592 = vsel %vm247, %v1082, %v1582
    %v1593 = vsel %vm917, %v1592, %v1586
    %v1594 = vsel %vm919, %v1593, %v1590
    %v1595 = vpack.c.bf16 %v1594, %v920
    %v1596 = vld [vmem:[#allocation7] sm:$0xf]
    %v1597 = vld [vmem:[#allocation7 + $0x4] sm:$0xf]
    %v1598 = vld [vmem:[#allocation7 + $0x8] sm:$0xf]
    %v1599 = vld [vmem:[#allocation7 + $0xc] sm:$0xf]
    %v1604 = vunpack.c.l.b16 %v1596
    %v1605 = vunpack.c.l.b16 %v1597
    %v1606 = vunpack.c.l.b16 %v1598
    %v1607 = vunpack.c.l.b16 %v1599
    %v1608 = vpack.c.b16 %v1605, %v1604
    %v1609 = vpack.c.b16 %v1607, %v1606
    %v1613 = vsel %vm139, %v1595, 0
    %1615 = vmatprep.subr.bf16.mxu0 0
    %1616 = vmatpush1.bf16.msra.mxu0 %v1608
    %1617 = vmatprep.subr.bf16.mxu0 0
    %1618 = vmatpush1.bf16.msra.mxu0 %v1609
    %1619 = vmatprep.subr.bf16.mxu0 0
    %1620 = vmatpush1.bf16.msra.mxu0 0
    %1621 = vmatprep.subr.bf16.mxu0 0
    %1622 = vmatpush1.bf16.msra.mxu0 0
    %1623 = vmatprep.subr.bf16.mxu0 0
    %1624 = vmatpush1.bf16.msra.mxu0 0
    %1625 = vmatprep.subr.bf16.mxu0 0
    %1626 = vmatpush1.bf16.msra.mxu0 0
    %1627 = vmatprep.subr.bf16.mxu0 0
    %1628 = vmatpush1.bf16.msra.mxu0 0
    %1629 = vmatprep.subr.bf16.mxu0 0
    %1630 = vmatpush1.bf16.msra.mxu0 0
    %1631 = vmatprep.subr.bf16.mxu0 0
    %1632 = vmatpush1.bf16.msra.mxu0 0
    %1633 = vmatprep.subr.bf16.mxu0 0
    %1634 = vmatpush1.bf16.msra.mxu0 0
    %1635 = vmatprep.subr.bf16.mxu0 0
    %1636 = vmatpush1.bf16.msra.mxu0 0
    %1637 = vmatprep.subr.bf16.mxu0 0
    %1638 = vmatpush1.bf16.msra.mxu0 0
    %1639 = vmatprep.subr.bf16.mxu0 0
    %1640 = vmatpush1.bf16.msra.mxu0 0
    %1641 = vmatprep.subr.bf16.mxu0 0
    %1642 = vmatpush1.bf16.msra.mxu0 0
    %1643 = vmatprep.subr.bf16.mxu0 0
    %1644 = vmatpush1.bf16.msra.mxu0 0
    %1645 = vmatprep.subr.bf16.mxu0 0
    %1646 = vmatpush1.bf16.msra.mxu0 0
    %1647 = vmatprep.mubr.bf16.mxu0 0
    %1648 = vmatmul.mubr.bf16.gmra.mrb[0].mxu0 %v1613
    %v1649 = vpop.f32.mrb[0].mxu0
    %v1650 = vadd.f32 0.0, %v1649
    %v1651 = vpop.f32.mrb[0].mxu0
    %v1652 = vpop.f32.mrb[0].mxu0
    %v1653 = vadd.f32 0.0, %v1652
    %v1654 = vpop.f32.mrb[0].mxu0
    %1655 = vdwg.mxu0
    %v1656 = vadd.f32 %v135, %v1650
    %v1657 = vadd.f32 %v136, %v1653
    %v1658 = vld [vmem:[#allocation8] sm:$0x1]
    %v1659 = vld [vmem:[#allocation10] sm:$0x1]
    %v1660 = vsel %vm139, %v1656, 0.0
    %1661 = vadd.xlane.f32.xlu0 %v1660
    %v1662 = vpop.xlane.xlu0 %1661
    %v1663 = vsel %vm139, %v1657, 0.0
    %1664 = vadd.xlane.f32.xlu0 %v1663
    %v1665 = vpop.xlane.xlu0 %1664
    %v1666 = vmul.f32 %v1662, %v146
    %v1667 = vmul.f32 %v1665, %v146
    %v1668 = vsub.f32 %v1656, %v1666
    %v1669 = vsub.f32 %v1657, %v1667
    %v1670 = vmul.f32 %v1668, %v1668
    %v1671 = vmul.f32 %v1669, %v1669
    %v1672 = vsel %vm139, %v1670, 0.0
    %1673 = vadd.xlane.f32.xlu0 %v1672
    %v1674 = vpop.xlane.xlu0 %1673
    %v1675 = vsel %vm139, %v1671, 0.0
    %1676 = vadd.xlane.f32.xlu0 %v1675
    %v1677 = vpop.xlane.xlu0 %1676
    %v1678 = vmul.f32 %v1674, %v146
    %v1679 = vmul.f32 %v1677, %v146
    %v1680 = vadd.f32 %v1678, 1e-05
    %v1681 = vadd.f32 %v1679, 1e-05
    %v1682 = vrsqrt.pop %v1680
    %v1683 = vrsqrt.pop %v1681
    %v1684 = vmul.f32 %v1668, %v1682
    %v1685 = vmul.f32 %v1669, %v1683
    %v1687 = vlaneseq
    %v1688 = vshrl.u32 %v1687, 7
    %v1689 = vsub.s32 0, %v1688
    %v1690 = vrot.slane %v1658, %v1689
    %v1692 = vmul.f32 %v1684, %v1690
    %v1693 = vmul.f32 %v1685, %v1690
    %v1695 = vlaneseq
    %v1696 = vshrl.u32 %v1695, 7
    %v1697 = vsub.s32 0, %v1696
    %v1698 = vrot.slane %v1659, %v1697
    %v1700 = vadd.f32 %v1692, %v1698
    %v1701 = vadd.f32 %v1693, %v1698
    %v1702 = vpack.c.bf16 %v1701, %v1700
    %v1703 = vld [vmem:[%s7] sm:$0xf]
    %v1704 = vld [vmem:[%s7 + $0x4] sm:$0xf]
    %v1705 = vld [vmem:[%s7 + $0x8] sm:$0xf]
    %v1706 = vld [vmem:[%s7 + $0xc] sm:$0xf]
    %v1707 = vld [vmem:[#allocation11] sm:$0x1]
    %v1709 = vlaneseq
    %v1710 = vshrl.u32 %v1709, 7
    %v1711 = vsub.s32 0, %v1710
    %v1712 = vrot.slane %v1707, %v1711
    %v1718 = vunpack.c.l.b16 %v1703
    %v1719 = vunpack.c.l.b16 %v1704
    %v1720 = vunpack.c.l.b16 %v1705
    %v1721 = vunpack.c.l.b16 %v1706
    %v1722 = vpack.c.b16 %v1719, %v1718
    %v1723 = vpack.c.b16 %v1721, %v1720
    %v1727 = vsel %vm139, %v1702, 0
    %1729 = vmatprep.subr.bf16.mxu0 0
    %1730 = vmatpush1.bf16.msra.mxu0 %v1722
    %1731 = vmatprep.subr.bf16.mxu0 0
    %1732 = vmatpush1.bf16.msra.mxu0 %v1723
    %1733 = vmatprep.subr.bf16.mxu0 0
    %1734 = vmatpush1.bf16.msra.mxu0 0
    %1735 = vmatprep.subr.bf16.mxu0 0
    %1736 = vmatpush1.bf16.msra.mxu0 0
    %1737 = vmatprep.subr.bf16.mxu0 0
    %1738 = vmatpush1.bf16.msra.mxu0 0
    %1739 = vmatprep.subr.bf16.mxu0 0
    %1740 = vmatpush1.bf16.msra.mxu0 0
    %1741 = vmatprep.subr.bf16.mxu0 0
    %1742 = vmatpush1.bf16.msra.mxu0 0
    %1743 = vmatprep.subr.bf16.mxu0 0
    %1744 = vmatpush1.bf16.msra.mxu0 0
    %1745 = vmatprep.subr.bf16.mxu0 0
    %1746 = vmatpush1.bf16.msra.mxu0 0
    %1747 = vmatprep.subr.bf16.mxu0 0
    %1748 = vmatpush1.bf16.msra.mxu0 0
    %1749 = vmatprep.subr.bf16.mxu0 0
    %1750 = vmatpush1.bf16.msra.mxu0 0
    %1751 = vmatprep.subr.bf16.mxu0 0
    %1752 = vmatpush1.bf16.msra.mxu0 0
    %1753 = vmatprep.subr.bf16.mxu0 0
    %1754 = vmatpush1.bf16.msra.mxu0 0
    %1755 = vmatprep.subr.bf16.mxu0 0
    %1756 = vmatpush1.bf16.msra.mxu0 0
    %1757 = vmatprep.subr.bf16.mxu0 0
    %1758 = vmatpush1.bf16.msra.mxu0 0
    %1759 = vmatprep.subr.bf16.mxu0 0
    %1760 = vmatpush1.bf16.msra.mxu0 0
    %1761 = vmatprep.mubr.bf16.mxu0 0
    %1762 = vmatmul.mubr.bf16.gmra.mrb[0].mxu0 %v1727
    %v1763 = vpop.f32.mrb[0].mxu0
    %v1764 = vadd.f32 %v1712, %v1763
    %v1765 = vpop.f32.mrb[0].mxu0
    %v1766 = vpop.f32.mrb[0].mxu0
    %v1767 = vadd.f32 %v1712, %v1766
    %v1768 = vpop.f32.mrb[0].mxu0
    %1769 = vdwg.mxu0
    %v1770 = vmul.f32 %v1764, 0.5
    %v1771 = vmul.f32 %v1767, 0.5
    %v1772 = vmul.f32 %v1764, 0.70710677
    %v1773 = vmul.f32 %v1767, 0.70710677
    %v1774 = verf.f32.pop %v1772
    %v1775 = verf.f32.pop %v1773
    %v1776 = vadd.f32 %v1774, 1.0
    %v1777 = vadd.f32 %v1775, 1.0
    %v1778 = vmul.f32 %v1770, %v1776
    %v1779 = vmul.f32 %v1771, %v1777
    %v1780 = vpack.c.bf16 %v1779, %v1778
    %v1781 = vld [vmem:[%s9] sm:$0xf]
    %v1782 = vld [vmem:[%s9 + $0x4] sm:$0xf]
    %v1783 = vld [vmem:[%s9 + $0x8] sm:$0xf]
    %v1784 = vld [vmem:[%s9 + $0xc] sm:$0xf]
    %v1785 = vld [vmem:[%s10] sm:$0x1]
    %v1787 = vlaneseq
    %v1788 = vshrl.u32 %v1787, 7
    %v1789 = vsub.s32 0, %v1788
    %v1790 = vrot.slane %v1785, %v1789
    %v1796 = vunpack.c.l.b16 %v1781
    %v1797 = vunpack.c.l.b16 %v1782
    %v1798 = vunpack.c.l.b16 %v1783
    %v1799 = vunpack.c.l.b16 %v1784
    %v1800 = vpack.c.b16 %v1797, %v1796
    %v1801 = vpack.c.b16 %v1799, %v1798
    %v1805 = vsel %vm139, %v1780, 0
    %1807 = vmatprep.subr.bf16.mxu0 0
    %1808 = vmatpush1.bf16.msra.mxu0 %v1800
    %1809 = vmatprep.subr.bf16.mxu0 0
    %1810 = vmatpush1.bf16.msra.mxu0 %v1801
    %1811 = vmatprep.subr.bf16.mxu0 0
    %1812 = vmatpush1.bf16.msra.mxu0 0
    %1813 = vmatprep.subr.bf16.mxu0 0
    %1814 = vmatpush1.bf16.msra.mxu0 0
    %1815 = vmatprep.subr.bf16.mxu0 0
    %1816 = vmatpush1.bf16.msra.mxu0 0
    %1817 = vmatprep.subr.bf16.mxu0 0
    %1818 = vmatpush1.bf16.msra.mxu0 0
    %1819 = vmatprep.subr.bf16.mxu0 0
    %1820 = vmatpush1.bf16.msra.mxu0 0
    %1821 = vmatprep.subr.bf16.mxu0 0
    %1822 = vmatpush1.bf16.msra.mxu0 0
    %1823 = vmatprep.subr.bf16.mxu0 0
    %1824 = vmatpush1.bf16.msra.mxu0 0
    %1825 = vmatprep.subr.bf16.mxu0 0
    %1826 = vmatpush1.bf16.msra.mxu0 0
    %1827 = vmatprep.subr.bf16.mxu0 0
    %1828 = vmatpush1.bf16.msra.mxu0 0
    %1829 = vmatprep.subr.bf16.mxu0 0
    %1830 = vmatpush1.bf16.msra.mxu0 0
    %1831 = vmatprep.subr.bf16.mxu0 0
    %1832 = vmatpush1.bf16.msra.mxu0 0
    %1833 = vmatprep.subr.bf16.mxu0 0
    %1834 = vmatpush1.bf16.msra.mxu0 0
    %1835 = vmatprep.subr.bf16.mxu0 0
    %1836 = vmatpush1.bf16.msra.mxu0 0
    %1837 = vmatprep.subr.bf16.mxu0 0
    %1838 = vmatpush1.bf16.msra.mxu0 0
    %1839 = vmatprep.mubr.bf16.mxu0 0
    %1840 = vmatmul.mubr.bf16.gmra.mrb[0].mxu0 %v1805
    %v1841 = vpop.f32.mrb[0].mxu0
    %v1842 = vadd.f32 %v1790, %v1841
    %v1843 = vpop.f32.mrb[0].mxu0
    %v1844 = vpop.f32.mrb[0].mxu0
    %v1845 = vadd.f32 %v1790, %v1844
    %v1846 = vpop.f32.mrb[0].mxu0
    %1847 = vdwg.mxu0
    %v1848 = vmul.f32 %v1842, 0.5
    %v1849 = vmul.f32 %v1845, 0.5
    %v1850 = vmul.f32 %v1842, 0.70710677
    %v1851 = vmul.f32 %v1845, 0.70710677
    %v1852 = verf.f32.pop %v1850
    %v1853 = verf.f32.pop %v1851
    %v1854 = vadd.f32 %v1852, 1.0
    %v1855 = vadd.f32 %v1853, 1.0
    %v1856 = vmul.f32 %v1848, %v1854
    %v1857 = vmul.f32 %v1849, %v1855
    %v1858 = vpack.c.bf16 %v1857, %v1856
    %v1859 = vld [vmem:[#allocation13] sm:$0xf]
    %v1860 = vld [vmem:[#allocation13 + $0x4] sm:$0xf]
    %v1861 = vld [vmem:[#allocation13 + $0x8] sm:$0xf]
    %v1862 = vld [vmem:[#allocation13 + $0xc] sm:$0xf]
    %v1863 = vld [vmem:[%s12] sm:$0x1]
    %v1865 = vlaneseq
    %v1866 = vshrl.u32 %v1865, 7
    %v1867 = vsub.s32 0, %v1866
    %v1868 = vrot.slane %v1863, %v1867
    %v1874 = vunpack.c.l.b16 %v1859
    %v1875 = vunpack.c.l.b16 %v1860
    %v1876 = vunpack.c.l.b16 %v1861
    %v1877 = vunpack.c.l.b16 %v1862
    %v1878 = vpack.c.b16 %v1875, %v1874
    %v1879 = vpack.c.b16 %v1877, %v1876
    %v1883 = vsel %vm139, %v1858, 0
    %1885 = vmatprep.subr.bf16.mxu0 0
    %1886 = vmatpush1.bf16.msra.mxu0 %v1878
    %1887 = vmatprep.subr.bf16.mxu0 0
    %1888 = vmatpush1.bf16.msra.mxu0 %v1879
    %1889 = vmatprep.subr.bf16.mxu0 0
    %1890 = vmatpush1.bf16.msra.mxu0 0
    %1891 = vmatprep.subr.bf16.mxu0 0
    %1892 = vmatpush1.bf16.msra.mxu0 0
    %1893 = vmatprep.subr.bf16.mxu0 0
    %1894 = vmatpush1.bf16.msra.mxu0 0
    %1895 = vmatprep.subr.bf16.mxu0 0
    %1896 = vmatpush1.bf16.msra.mxu0 0
    %1897 = vmatprep.subr.bf16.mxu0 0
    %1898 = vmatpush1.bf16.msra.mxu0 0
    %1899 = vmatprep.subr.bf16.mxu0 0
    %1900 = vmatpush1.bf16.msra.mxu0 0
    %1901 = vmatprep.subr.bf16.mxu0 0
    %1902 = vmatpush1.bf16.msra.mxu0 0
    %1903 = vmatprep.subr.bf16.mxu0 0
    %1904 = vmatpush1.bf16.msra.mxu0 0
    %1905 = vmatprep.subr.bf16.mxu0 0
    %1906 = vmatpush1.bf16.msra.mxu0 0
    %1907 = vmatprep.subr.bf16.mxu0 0
    %1908 = vmatpush1.bf16.msra.mxu0 0
    %1909 = vmatprep.subr.bf16.mxu0 0
    %1910 = vmatpush1.bf16.msra.mxu0 0
    %1911 = vmatprep.subr.bf16.mxu0 0
    %1912 = vmatpush1.bf16.msra.mxu0 0
    %1913 = vmatprep.subr.bf16.mxu0 0
    %1914 = vmatpush1.bf16.msra.mxu0 0
    %1915 = vmatprep.subr.bf16.mxu0 0
    %1916 = vmatpush1.bf16.msra.mxu0 0
    %1917 = vmatprep.mubr.bf16.mxu0 0
    %1918 = vmatmul.mubr.bf16.gmra.mrb[0].mxu0 %v1883
    %v1919 = vpop.f32.mrb[0].mxu0
    %v1920 = vadd.f32 %v1868, %v1919
    %v1921 = vpop.f32.mrb[0].mxu0
    %v1922 = vpop.f32.mrb[0].mxu0
    %v1923 = vadd.f32 %v1868, %v1922
    %v1924 = vpop.f32.mrb[0].mxu0
    %1925 = vdwg.mxu0
    %v1926 = vadd.f32 %v1656, %v1920
    %v1927 = vadd.f32 %v1657, %v1923
    %1928 = vst.msk [vmem:[#allocation14] sm:$0xff] %vm139, %v1926
    %1929 = vst.msk [vmem:[#allocation14 + $0x8] sm:$0xff] %vm139, %v1927
    // Predicated region
    $region82: #{tpu_custom_call.1} parent=1 // pred_check
      _
    $region83: #{tpu_custom_call.1} parent=1 // pred_check_branch
      %1931 = sbr.rel (0) target = $region85
    $region84: #{tpu_custom_call.1} parent=1 // pred_region
      %s1933 = ssub.s32 256, 256
      %1934 = vsyncadd [#allocation4], %s1933
      %s1935 = sshll.u32 [#allocation14], 4
      %s1936 = int_to_ptr.vmem [resolvable:$true] %s1935
      %1941 = dma.vmem_to_hbm [thread:$0]  %s1936, 256, %s13, [#allocation4], 128, 128, 8
    $region85: #{tpu_custom_call.1} parent=1 // pred_fallthru
      _
    // Predicated region
    $region86: #{tpu_custom_call.1} parent=1 // pred_check
      _
    $region87: #{tpu_custom_call.1} parent=1 // pred_check_branch
      %1943 = sbr.rel (0) target = $region89
    $region88: #{tpu_custom_call.1} parent=1 // pred_region
      %1944 = dma.done [#allocation4], 256
    $region89: #{tpu_custom_call.1} parent=1 // pred_fallthru
      _
    %1945 = vsyncpa [#allocation3], 1
    %1946 = vsyncpa [#allocation6], 1
    %1947 = vsyncpa [#allocation9], 1
    %1948 = vsyncpa [#allocation12], 1
    %1949 = vsyncpa [#allocation4], 1

</llo_original>
